<compile_context>
chip_gen: v7x
topology: tpu7x:2x2x1
jax: 0.10.0
libtpu: 0.0.40
codegen_flags: <defaults>
</compile_context>

<pallas_src>
import functools

import jax
import jax.numpy as jnp
from jax.experimental import pallas as pl
from jax.experimental.pallas import tpu as pltpu


def lstm_kernel(x_ref, wx_ref, wh_ref, b_ref, out_ref, c_sc, h_sc):
    """One time-chunk of the LSTM recurrence.

    x_ref : (Bt, Tc, F)     inputs for this (batch tile, time chunk), f32
    wx_ref: (F, 4H)         fused input->gate weights  [forget|in_sig|in_tanh|out]
    wh_ref: (H, 4H)         fused hidden->gate weights
    b_ref : (1, 4H)         fused gate bias, f32
    out_ref:(Tc, 2, Bt, H)  out[i, 0] = cell, out[i, 1] = hidden
    c_sc, h_sc: (Bt, H) f32 persistent recurrent state (VMEM scratch)
    """
    t_chunk = pl.program_id(1)

    @pl.when(t_chunk == 0)
    def _():
        c_sc[...] = jnp.zeros_like(c_sc)
        h_sc[...] = jnp.zeros_like(h_sc)

    Tc = x_ref.shape[1]
    H = c_sc.shape[-1]
    cdt = wx_ref.dtype              # MXU compute dtype (f32 or bf16)

    wx = wx_ref[...]                # (F, 4H), loaded once per chunk
    wh = wh_ref[...]                # (H, 4H)
    b = b_ref[...]                  # (1, 4H), f32

    c = c_sc[...]                   # carried in vregs within the chunk
    h = h_sc[...]

    for i in range(Tc):             # static unroll; Tc is small
        x_t = x_ref[:, i, :].astype(cdt)                       # (Bt, F)
        z = (jnp.dot(x_t, wx, preferred_element_type=jnp.float32)
             + jnp.dot(h.astype(cdt), wh,
                       preferred_element_type=jnp.float32)
             + b)                                              # (Bt, 4H) f32
        f_gate = jax.nn.sigmoid(z[:, 0 * H:1 * H])
        i_sig = jax.nn.sigmoid(z[:, 1 * H:2 * H])
        i_tanh = jnp.tanh(z[:, 2 * H:3 * H])
        o_gate = jax.nn.sigmoid(z[:, 3 * H:4 * H])
        c = f_gate * c + i_sig * i_tanh
        h = jnp.tanh(c) * o_gate
        out_ref[i, 0] = c
        out_ref[i, 1] = h

    c_sc[...] = c
    h_sc[...] = h


@functools.partial(
    jax.jit, static_argnames=("hidden_size", "time_block", "compute_dtype"))
def lstm_forward(x, wx, wh, b, *, hidden_size, time_block=None,
                 compute_dtype=jnp.float32):
    """x: (B, T, F); wx: (4, F, H); wh: (4, H, H); b: (4, H) -> (T, 2, B, H)."""
    B, T, F = x.shape
    H = hidden_size

    if time_block is None:
        time_block = next(tc for tc in (32, 16, 8, T)
                          if T % tc == 0 and (tc % 8 == 0 or tc == T))
    Tc = time_block
    assert T % Tc == 0, "time_block must divide the sequence length"
    assert Tc % 8 == 0 or Tc == T, \
        "time_block must be a multiple of 8 (sublane tiling) or equal to T"

    # Fuse the four per-gate weights into one lane-dense matmul pair.
    # wx_f[:, g*H:(g+1)*H] == wx[g], same for wh_f / b_f.
    wx_f = jnp.transpose(wx, (1, 0, 2)).reshape(F, 4 * H).astype(compute_dtype)
    wh_f = jnp.transpose(wh, (1, 0, 2)).reshape(H, 4 * H).astype(compute_dtype)
    b_f = b.reshape(1, 4 * H).astype(jnp.float32)

    Bt = B                          # one batch tile here; axis kept for megacore
    grid = (B // Bt, T // Tc)

    return pl.pallas_call(
        lstm_kernel,
        out_shape=jax.ShapeDtypeStruct((T, 2, B, H), jnp.float32),
        grid_spec=pltpu.PrefetchScalarGridSpec(
            num_scalar_prefetch=0,
            grid=grid,
            in_specs=[
                pl.BlockSpec((Bt, Tc, F), lambda bb, tt: (bb, tt, 0)),
                pl.BlockSpec((F, 4 * H), lambda bb, tt: (0, 0)),
                pl.BlockSpec((H, 4 * H), lambda bb, tt: (0, 0)),
                pl.BlockSpec((1, 4 * H), lambda bb, tt: (0, 0)),
            ],
            out_specs=pl.BlockSpec((Tc, 2, Bt, H),
                                   lambda bb, tt: (tt, 0, bb, 0)),
            scratch_shapes=[
                pltpu.VMEM((Bt, H), jnp.float32),   # cell state
                pltpu.VMEM((Bt, H), jnp.float32),   # hidden state
            ],
        ),
        compiler_params=pltpu.CompilerParams(
            # batch is independent -> parallel (megacore / v7x second TC);
            # time is the sequential recurrence -> arbitrary.
            dimension_semantics=("parallel", "arbitrary")),
    )(x, wx_f, wh_f, b_f)


def lstm_reference(x, wx, wh, b):
    """Pure-JAX reference mirroring the PyTorch module."""
    B, T, F = x.shape
    H = wh.shape[-1]

    def step(carry, x_t):
        c, h = carry
        z = [x_t @ wx[g] + h @ wh[g] + b[g] for g in range(4)]
        f = jax.nn.sigmoid(z[0])
        i = jax.nn.sigmoid(z[1]) * jnp.tanh(z[2])
        o = jax.nn.sigmoid(z[3])
        c_new = f * c + i
        h_new = jnp.tanh(c_new) * o
        return (c_new, h_new), jnp.stack((c_new, h_new))

    init = (jnp.zeros((B, H), jnp.float32), jnp.zeros((B, H), jnp.float32))
    _, outs = jax.lax.scan(step, init, jnp.transpose(x, (1, 0, 2)))
    return outs  # (T, 2, B, H)


if __name__ == "__main__":
    # Small shapes consistent with the module's forward: x is (bs, t, in_features).
    bs, seq, in_features, hidden = 2, 16, 4, 32

    key = jax.random.PRNGKey(0)
    kx, kwx, kwh, kb = jax.random.split(key, 4)

    x = jax.random.normal(kx, (bs, seq, in_features), dtype=jnp.float32)

    # nn.Linear(in+hidden, hidden) weights, split into x-part / h-part per gate.
    bound = float((in_features + hidden) ** -0.5)
    wx = jax.random.uniform(kwx, (4, in_features, hidden),
                            minval=-bound, maxval=bound, dtype=jnp.float32)
    wh = jax.random.uniform(kwh, (4, hidden, hidden),
                            minval=-bound, maxval=bound, dtype=jnp.float32)
    b = jax.random.uniform(kb, (4, hidden),
                           minval=-bound, maxval=bound, dtype=jnp.float32)

    ref = lstm_reference(x, wx, wh, b)

    # f32 path: exact match with the pure-JAX reference.
    out = lstm_forward(x, wx, wh, b, hidden_size=hidden, time_block=8,
                       compute_dtype=jnp.float32)
    out = jax.block_until_ready(out)
    assert out.shape == (seq, 2, bs, hidden), out.shape
    assert jnp.allclose(out, ref, atol=1e-5, rtol=1e-5), "f32 mismatch vs reference"

    # bf16 MXU path (v6e / v7x fast path): weights + matmul operands in bf16,
    # f32 accumulation, gates and (c, h) state in f32.  Typical error ~1e-2.
    out_bf16 = lstm_forward(x, wx, wh, b, hidden_size=hidden, time_block=8,
                            compute_dtype=jnp.bfloat16)
    out_bf16 = jax.block_until_ready(out_bf16)
    assert jnp.allclose(out_bf16, ref, atol=1e-1, rtol=1e-1), \
        "bf16 mismatch vs reference"

    print("KERNEL_OK")
</pallas_src>

<mosaic_0001>
module attributes {stable_mosaic.version = 11 : i64} {
  func.func @lstm_kernel(%arg0: i32, %arg1: i32, %arg2: memref<2x8x4xf32, #tpu.memory_space<vmem>>, %arg3: memref<4x128xf32, #tpu.memory_space<vmem>>, %arg4: memref<32x128xf32, #tpu.memory_space<vmem>>, %arg5: memref<1x128xf32, #tpu.memory_space<vmem>>, %arg6: memref<8x2x2x32xf32, #tpu.memory_space<vmem>>, %arg7: memref<2x32xf32, #tpu.memory_space<vmem>>, %arg8: memref<2x32xf32, #tpu.memory_space<vmem>>) attributes {dimension_semantics = [#tpu.dimension_semantics<parallel>, #tpu.dimension_semantics<arbitrary>], iteration_bounds = array<i64: 1, 2>, scalar_prefetch = 0 : i64, scratch_operands = 2 : i64, tpu.core_type = #tpu.core_type<tc>, window_params = [{transform_indices = @transform_0, window_bounds = array<i64: 2, 8, 4>}, {pipeline_mode = #tpu.pipeline_mode<synchronous>, transform_indices = @transform_1, window_bounds = array<i64: 4, 128>}, {pipeline_mode = #tpu.pipeline_mode<synchronous>, transform_indices = @transform_2, window_bounds = array<i64: 32, 128>}, {pipeline_mode = #tpu.pipeline_mode<synchronous>, transform_indices = @transform_3, window_bounds = array<i64: 1, 128>}, {transform_indices = @transform_4, window_bounds = array<i64: 8, 2, 2, 32>}]} {
    %c0_i32 = arith.constant 0 : i32
    %0 = arith.cmpi eq, %arg1, %c0_i32 : i32
    %1 = arith.extui %0 : i1 to i32
    %c0_i32_0 = arith.constant 0 : i32
    %2 = arith.cmpi ne, %1, %c0_i32_0 : i32
    scf.if %2 {
      %cst_134 = arith.constant 0.000000e+00 : f32
      %314 = vector.broadcast %cst_134 : f32 to vector<2x32xf32>
      %c0_135 = arith.constant 0 : index
      %c0_136 = arith.constant 0 : index
      %315 = vector.load %arg7[%c0_135, %c0_136] : memref<2x32xf32, #tpu.memory_space<vmem>>, vector<2x32xf32>
      tpu.vector_store %arg7[%c0_135, %c0_136], %314 {strides = array<i32>} : memref<2x32xf32, #tpu.memory_space<vmem>>, vector<2x32xf32>,
      %cst_137 = arith.constant 0.000000e+00 : f32
      %316 = vector.broadcast %cst_137 : f32 to vector<2x32xf32>
      %c0_138 = arith.constant 0 : index
      %c0_139 = arith.constant 0 : index
      %317 = vector.load %arg8[%c0_138, %c0_139] : memref<2x32xf32, #tpu.memory_space<vmem>>, vector<2x32xf32>
      tpu.vector_store %arg8[%c0_138, %c0_139], %316 {strides = array<i32>} : memref<2x32xf32, #tpu.memory_space<vmem>>, vector<2x32xf32>,
    } else {
    }
    %c0 = arith.constant 0 : index
    %c0_1 = arith.constant 0 : index
    %3 = vector.load %arg3[%c0, %c0_1] : memref<4x128xf32, #tpu.memory_space<vmem>>, vector<4x128xf32>
    %c0_2 = arith.constant 0 : index
    %c0_3 = arith.constant 0 : index
    %4 = vector.load %arg4[%c0_2, %c0_3] : memref<32x128xf32, #tpu.memory_space<vmem>>, vector<32x128xf32>
    %c0_4 = arith.constant 0 : index
    %c0_5 = arith.constant 0 : index
    %5 = vector.load %arg5[%c0_4, %c0_5] : memref<1x128xf32, #tpu.memory_space<vmem>>, vector<1x128xf32>
    %c0_6 = arith.constant 0 : index
    %c0_7 = arith.constant 0 : index
    %6 = vector.load %arg7[%c0_6, %c0_7] : memref<2x32xf32, #tpu.memory_space<vmem>>, vector<2x32xf32>
    %c0_8 = arith.constant 0 : index
    %c0_9 = arith.constant 0 : index
    %7 = vector.load %arg8[%c0_8, %c0_9] : memref<2x32xf32, #tpu.memory_space<vmem>>, vector<2x32xf32>
    %c0_10 = arith.constant 0 : index
    %c0_11 = arith.constant 0 : index
    %c0_12 = arith.constant 0 : index
    %8 = vector.load %arg2[%c0_10, %c0_11, %c0_12] : memref<2x8x4xf32, #tpu.memory_space<vmem>>, vector<2x1x4xf32>
    %9 = vector.shape_cast %8 : vector<2x1x4xf32> to vector<2x4xf32>
    %cst = arith.constant dense<0.000000e+00> : vector<2x128xf32>
    %10 = tpu.matmul %9, %3, %cst {dimension_numbers = #tpu.dot_dimension_numbers<[1], [0], [0], [1], [0, 0, 1, 1], [], []>} : vector<2x4xf32>, vector<4x128xf32>, vector<2x128xf32> -> vector<2x128xf32>
    %cst_13 = arith.constant dense<0.000000e+00> : vector<2x128xf32>
    %11 = tpu.matmul %7, %4, %cst_13 {dimension_numbers = #tpu.dot_dimension_numbers<[1], [0], [0], [1], [0, 0, 1, 1], [], []>} : vector<2x32xf32>, vector<32x128xf32>, vector<2x128xf32> -> vector<2x128xf32>
    %12 = arith.addf %10, %11 : vector<2x128xf32>
    %13 = vector.broadcast %5 : vector<1x128xf32> to vector<2x128xf32>
    %14 = arith.addf %12, %13 : vector<2x128xf32>
    %15 = vector.extract_strided_slice %14 {offsets = [0, 0], sizes = [2, 32], strides = [1, 1]} : vector<2x128xf32> to vector<2x32xf32>
    %16 = arith.negf %15 : vector<2x32xf32>
    %17 = math.exp %16 : vector<2x32xf32>
    %cst_14 = arith.constant 1.000000e+00 : f32
    %18 = vector.broadcast %cst_14 : f32 to vector<2x32xf32>
    %19 = arith.addf %18, %17 : vector<2x32xf32>
    %20 = arith.divf %18, %19 : vector<2x32xf32>
    %21 = vector.extract_strided_slice %14 {offsets = [0, 32], sizes = [2, 32], strides = [1, 1]} : vector<2x128xf32> to vector<2x32xf32>
    %22 = arith.negf %21 : vector<2x32xf32>
    %23 = math.exp %22 : vector<2x32xf32>
    %cst_15 = arith.constant 1.000000e+00 : f32
    %24 = vector.broadcast %cst_15 : f32 to vector<2x32xf32>
    %25 = arith.addf %24, %23 : vector<2x32xf32>
    %26 = arith.divf %24, %25 : vector<2x32xf32>
    %27 = vector.extract_strided_slice %14 {offsets = [0, 64], sizes = [2, 32], strides = [1, 1]} : vector<2x128xf32> to vector<2x32xf32>
    %28 = math.tanh %27 : vector<2x32xf32>
    %29 = vector.extract_strided_slice %14 {offsets = [0, 96], sizes = [2, 32], strides = [1, 1]} : vector<2x128xf32> to vector<2x32xf32>
    %30 = arith.negf %29 : vector<2x32xf32>
    %31 = math.exp %30 : vector<2x32xf32>
    %cst_16 = arith.constant 1.000000e+00 : f32
    %32 = vector.broadcast %cst_16 : f32 to vector<2x32xf32>
    %33 = arith.addf %32, %31 : vector<2x32xf32>
    %34 = arith.divf %32, %33 : vector<2x32xf32>
    %35 = arith.mulf %20, %6 : vector<2x32xf32>
    %36 = arith.mulf %26, %28 : vector<2x32xf32>
    %37 = arith.addf %35, %36 : vector<2x32xf32>
    %38 = math.tanh %37 : vector<2x32xf32>
    %39 = arith.mulf %38, %34 : vector<2x32xf32>
    %c0_17 = arith.constant 0 : index
    %c0_18 = arith.constant 0 : index
    %c0_19 = arith.constant 0 : index
    %c0_20 = arith.constant 0 : index
    %40 = vector.load %arg6[%c0_17, %c0_18, %c0_19, %c0_20] : memref<8x2x2x32xf32, #tpu.memory_space<vmem>>, vector<1x1x2x32xf32>
    %41 = vector.shape_cast %40 : vector<1x1x2x32xf32> to vector<2x32xf32>
    %42 = vector.shape_cast %37 : vector<2x32xf32> to vector<1x1x2x32xf32>
    tpu.vector_store %arg6[%c0_17, %c0_18, %c0_19, %c0_20], %42 {strides = array<i32>} : memref<8x2x2x32xf32, #tpu.memory_space<vmem>>, vector<1x1x2x32xf32>,
    %c0_21 = arith.constant 0 : index
    %c1 = arith.constant 1 : index
    %c0_22 = arith.constant 0 : index
    %c0_23 = arith.constant 0 : index
    %43 = vector.load %arg6[%c0_21, %c1, %c0_22, %c0_23] : memref<8x2x2x32xf32, #tpu.memory_space<vmem>>, vector<1x1x2x32xf32>
    %44 = vector.shape_cast %43 : vector<1x1x2x32xf32> to vector<2x32xf32>
    %45 = vector.shape_cast %39 : vector<2x32xf32> to vector<1x1x2x32xf32>
    tpu.vector_store %arg6[%c0_21, %c1, %c0_22, %c0_23], %45 {strides = array<i32>} : memref<8x2x2x32xf32, #tpu.memory_space<vmem>>, vector<1x1x2x32xf32>,
    %c0_24 = arith.constant 0 : index
    %c1_25 = arith.constant 1 : index
    %c0_26 = arith.constant 0 : index
    %46 = vector.load %arg2[%c0_24, %c1_25, %c0_26] : memref<2x8x4xf32, #tpu.memory_space<vmem>>, vector<2x1x4xf32>
    %47 = vector.shape_cast %46 : vector<2x1x4xf32> to vector<2x4xf32>
    %cst_27 = arith.constant dense<0.000000e+00> : vector<2x128xf32>
    %48 = tpu.matmul %47, %3, %cst_27 {dimension_numbers = #tpu.dot_dimension_numbers<[1], [0], [0], [1], [0, 0, 1, 1], [], []>} : vector<2x4xf32>, vector<4x128xf32>, vector<2x128xf32> -> vector<2x128xf32>
    %cst_28 = arith.constant dense<0.000000e+00> : vector<2x128xf32>
    %49 = tpu.matmul %39, %4, %cst_28 {dimension_numbers = #tpu.dot_dimension_numbers<[1], [0], [0], [1], [0, 0, 1, 1], [], []>} : vector<2x32xf32>, vector<32x128xf32>, vector<2x128xf32> -> vector<2x128xf32>
    %50 = arith.addf %48, %49 : vector<2x128xf32>
    %51 = vector.broadcast %5 : vector<1x128xf32> to vector<2x128xf32>
    %52 = arith.addf %50, %51 : vector<2x128xf32>
    %53 = vector.extract_strided_slice %52 {offsets = [0, 0], sizes = [2, 32], strides = [1, 1]} : vector<2x128xf32> to vector<2x32xf32>
    %54 = arith.negf %53 : vector<2x32xf32>
    %55 = math.exp %54 : vector<2x32xf32>
    %cst_29 = arith.constant 1.000000e+00 : f32
    %56 = vector.broadcast %cst_29 : f32 to vector<2x32xf32>
    %57 = arith.addf %56, %55 : vector<2x32xf32>
    %58 = arith.divf %56, %57 : vector<2x32xf32>
    %59 = vector.extract_strided_slice %52 {offsets = [0, 32], sizes = [2, 32], strides = [1, 1]} : vector<2x128xf32> to vector<2x32xf32>
    %60 = arith.negf %59 : vector<2x32xf32>
    %61 = math.exp %60 : vector<2x32xf32>
    %cst_30 = arith.constant 1.000000e+00 : f32
    %62 = vector.broadcast %cst_30 : f32 to vector<2x32xf32>
    %63 = arith.addf %62, %61 : vector<2x32xf32>
    %64 = arith.divf %62, %63 : vector<2x32xf32>
    %65 = vector.extract_strided_slice %52 {offsets = [0, 64], sizes = [2, 32], strides = [1, 1]} : vector<2x128xf32> to vector<2x32xf32>
    %66 = math.tanh %65 : vector<2x32xf32>
    %67 = vector.extract_strided_slice %52 {offsets = [0, 96], sizes = [2, 32], strides = [1, 1]} : vector<2x128xf32> to vector<2x32xf32>
    %68 = arith.negf %67 : vector<2x32xf32>
    %69 = math.exp %68 : vector<2x32xf32>
    %cst_31 = arith.constant 1.000000e+00 : f32
    %70 = vector.broadcast %cst_31 : f32 to vector<2x32xf32>
    %71 = arith.addf %70, %69 : vector<2x32xf32>
    %72 = arith.divf %70, %71 : vector<2x32xf32>
    %73 = arith.mulf %58, %37 : vector<2x32xf32>
    %74 = arith.mulf %64, %66 : vector<2x32xf32>
    %75 = arith.addf %73, %74 : vector<2x32xf32>
    %76 = math.tanh %75 : vector<2x32xf32>
    %77 = arith.mulf %76, %72 : vector<2x32xf32>
    %c1_32 = arith.constant 1 : index
    %c0_33 = arith.constant 0 : index
    %c0_34 = arith.constant 0 : index
    %c0_35 = arith.constant 0 : index
    %78 = vector.load %arg6[%c1_32, %c0_33, %c0_34, %c0_35] : memref<8x2x2x32xf32, #tpu.memory_space<vmem>>, vector<1x1x2x32xf32>
    %79 = vector.shape_cast %78 : vector<1x1x2x32xf32> to vector<2x32xf32>
    %80 = vector.shape_cast %75 : vector<2x32xf32> to vector<1x1x2x32xf32>
    tpu.vector_store %arg6[%c1_32, %c0_33, %c0_34, %c0_35], %80 {strides = array<i32>} : memref<8x2x2x32xf32, #tpu.memory_space<vmem>>, vector<1x1x2x32xf32>,
    %c1_36 = arith.constant 1 : index
    %c1_37 = arith.constant 1 : index
    %c0_38 = arith.constant 0 : index
    %c0_39 = arith.constant 0 : index
    %81 = vector.load %arg6[%c1_36, %c1_37, %c0_38, %c0_39] : memref<8x2x2x32xf32, #tpu.memory_space<vmem>>, vector<1x1x2x32xf32>
    %82 = vector.shape_cast %81 : vector<1x1x2x32xf32> to vector<2x32xf32>
    %83 = vector.shape_cast %77 : vector<2x32xf32> to vector<1x1x2x32xf32>
    tpu.vector_store %arg6[%c1_36, %c1_37, %c0_38, %c0_39], %83 {strides = array<i32>} : memref<8x2x2x32xf32, #tpu.memory_space<vmem>>, vector<1x1x2x32xf32>,
    %c0_40 = arith.constant 0 : index
    %c2 = arith.constant 2 : index
    %c0_41 = arith.constant 0 : index
    %84 = vector.load %arg2[%c0_40, %c2, %c0_41] : memref<2x8x4xf32, #tpu.memory_space<vmem>>, vector<2x1x4xf32>
    %85 = vector.shape_cast %84 : vector<2x1x4xf32> to vector<2x4xf32>
    %cst_42 = arith.constant dense<0.000000e+00> : vector<2x128xf32>
    %86 = tpu.matmul %85, %3, %cst_42 {dimension_numbers = #tpu.dot_dimension_numbers<[1], [0], [0], [1], [0, 0, 1, 1], [], []>} : vector<2x4xf32>, vector<4x128xf32>, vector<2x128xf32> -> vector<2x128xf32>
    %cst_43 = arith.constant dense<0.000000e+00> : vector<2x128xf32>
    %87 = tpu.matmul %77, %4, %cst_43 {dimension_numbers = #tpu.dot_dimension_numbers<[1], [0], [0], [1], [0, 0, 1, 1], [], []>} : vector<2x32xf32>, vector<32x128xf32>, vector<2x128xf32> -> vector<2x128xf32>
    %88 = arith.addf %86, %87 : vector<2x128xf32>
    %89 = vector.broadcast %5 : vector<1x128xf32> to vector<2x128xf32>
    %90 = arith.addf %88, %89 : vector<2x128xf32>
    %91 = vector.extract_strided_slice %90 {offsets = [0, 0], sizes = [2, 32], strides = [1, 1]} : vector<2x128xf32> to vector<2x32xf32>
    %92 = arith.negf %91 : vector<2x32xf32>
    %93 = math.exp %92 : vector<2x32xf32>
    %cst_44 = arith.constant 1.000000e+00 : f32
    %94 = vector.broadcast %cst_44 : f32 to vector<2x32xf32>
    %95 = arith.addf %94, %93 : vector<2x32xf32>
    %96 = arith.divf %94, %95 : vector<2x32xf32>
    %97 = vector.extract_strided_slice %90 {offsets = [0, 32], sizes = [2, 32], strides = [1, 1]} : vector<2x128xf32> to vector<2x32xf32>
    %98 = arith.negf %97 : vector<2x32xf32>
    %99 = math.exp %98 : vector<2x32xf32>
    %cst_45 = arith.constant 1.000000e+00 : f32
    %100 = vector.broadcast %cst_45 : f32 to vector<2x32xf32>
    %101 = arith.addf %100, %99 : vector<2x32xf32>
    %102 = arith.divf %100, %101 : vector<2x32xf32>
    %103 = vector.extract_strided_slice %90 {offsets = [0, 64], sizes = [2, 32], strides = [1, 1]} : vector<2x128xf32> to vector<2x32xf32>
    %104 = math.tanh %103 : vector<2x32xf32>
    %105 = vector.extract_strided_slice %90 {offsets = [0, 96], sizes = [2, 32], strides = [1, 1]} : vector<2x128xf32> to vector<2x32xf32>
    %106 = arith.negf %105 : vector<2x32xf32>
    %107 = math.exp %106 : vector<2x32xf32>
    %cst_46 = arith.constant 1.000000e+00 : f32
    %108 = vector.broadcast %cst_46 : f32 to vector<2x32xf32>
    %109 = arith.addf %108, %107 : vector<2x32xf32>
    %110 = arith.divf %108, %109 : vector<2x32xf32>
    %111 = arith.mulf %96, %75 : vector<2x32xf32>
    %112 = arith.mulf %102, %104 : vector<2x32xf32>
    %113 = arith.addf %111, %112 : vector<2x32xf32>
    %114 = math.tanh %113 : vector<2x32xf32>
    %115 = arith.mulf %114, %110 : vector<2x32xf32>
    %c2_47 = arith.constant 2 : index
    %c0_48 = arith.constant 0 : index
    %c0_49 = arith.constant 0 : index
    %c0_50 = arith.constant 0 : index
    %116 = vector.load %arg6[%c2_47, %c0_48, %c0_49, %c0_50] : memref<8x2x2x32xf32, #tpu.memory_space<vmem>>, vector<1x1x2x32xf32>
    %117 = vector.shape_cast %116 : vector<1x1x2x32xf32> to vector<2x32xf32>
    %118 = vector.shape_cast %113 : vector<2x32xf32> to vector<1x1x2x32xf32>
    tpu.vector_store %arg6[%c2_47, %c0_48, %c0_49, %c0_50], %118 {strides = array<i32>} : memref<8x2x2x32xf32, #tpu.memory_space<vmem>>, vector<1x1x2x32xf32>,
    %c2_51 = arith.constant 2 : index
    %c1_52 = arith.constant 1 : index
    %c0_53 = arith.constant 0 : index
    %c0_54 = arith.constant 0 : index
    %119 = vector.load %arg6[%c2_51, %c1_52, %c0_53, %c0_54] : memref<8x2x2x32xf32, #tpu.memory_space<vmem>>, vector<1x1x2x32xf32>
    %120 = vector.shape_cast %119 : vector<1x1x2x32xf32> to vector<2x32xf32>
    %121 = vector.shape_cast %115 : vector<2x32xf32> to vector<1x1x2x32xf32>
    tpu.vector_store %arg6[%c2_51, %c1_52, %c0_53, %c0_54], %121 {strides = array<i32>} : memref<8x2x2x32xf32, #tpu.memory_space<vmem>>, vector<1x1x2x32xf32>,
    %c0_55 = arith.constant 0 : index
    %c3 = arith.constant 3 : index
    %c0_56 = arith.constant 0 : index
    %122 = vector.load %arg2[%c0_55, %c3, %c0_56] : memref<2x8x4xf32, #tpu.memory_space<vmem>>, vector<2x1x4xf32>
    %123 = vector.shape_cast %122 : vector<2x1x4xf32> to vector<2x4xf32>
    %cst_57 = arith.constant dense<0.000000e+00> : vector<2x128xf32>
    %124 = tpu.matmul %123, %3, %cst_57 {dimension_numbers = #tpu.dot_dimension_numbers<[1], [0], [0], [1], [0, 0, 1, 1], [], []>} : vector<2x4xf32>, vector<4x128xf32>, vector<2x128xf32> -> vector<2x128xf32>
    %cst_58 = arith.constant dense<0.000000e+00> : vector<2x128xf32>
    %125 = tpu.matmul %115, %4, %cst_58 {dimension_numbers = #tpu.dot_dimension_numbers<[1], [0], [0], [1], [0, 0, 1, 1], [], []>} : vector<2x32xf32>, vector<32x128xf32>, vector<2x128xf32> -> vector<2x128xf32>
    %126 = arith.addf %124, %125 : vector<2x128xf32>
    %127 = vector.broadcast %5 : vector<1x128xf32> to vector<2x128xf32>
    %128 = arith.addf %126, %127 : vector<2x128xf32>
    %129 = vector.extract_strided_slice %128 {offsets = [0, 0], sizes = [2, 32], strides = [1, 1]} : vector<2x128xf32> to vector<2x32xf32>
    %130 = arith.negf %129 : vector<2x32xf32>
    %131 = math.exp %130 : vector<2x32xf32>
    %cst_59 = arith.constant 1.000000e+00 : f32
    %132 = vector.broadcast %cst_59 : f32 to vector<2x32xf32>
    %133 = arith.addf %132, %131 : vector<2x32xf32>
    %134 = arith.divf %132, %133 : vector<2x32xf32>
    %135 = vector.extract_strided_slice %128 {offsets = [0, 32], sizes = [2, 32], strides = [1, 1]} : vector<2x128xf32> to vector<2x32xf32>
    %136 = arith.negf %135 : vector<2x32xf32>
    %137 = math.exp %136 : vector<2x32xf32>
    %cst_60 = arith.constant 1.000000e+00 : f32
    %138 = vector.broadcast %cst_60 : f32 to vector<2x32xf32>
    %139 = arith.addf %138, %137 : vector<2x32xf32>
    %140 = arith.divf %138, %139 : vector<2x32xf32>
    %141 = vector.extract_strided_slice %128 {offsets = [0, 64], sizes = [2, 32], strides = [1, 1]} : vector<2x128xf32> to vector<2x32xf32>
    %142 = math.tanh %141 : vector<2x32xf32>
    %143 = vector.extract_strided_slice %128 {offsets = [0, 96], sizes = [2, 32], strides = [1, 1]} : vector<2x128xf32> to vector<2x32xf32>
    %144 = arith.negf %143 : vector<2x32xf32>
    %145 = math.exp %144 : vector<2x32xf32>
    %cst_61 = arith.constant 1.000000e+00 : f32
    %146 = vector.broadcast %cst_61 : f32 to vector<2x32xf32>
    %147 = arith.addf %146, %145 : vector<2x32xf32>
    %148 = arith.divf %146, %147 : vector<2x32xf32>
    %149 = arith.mulf %134, %113 : vector<2x32xf32>
    %150 = arith.mulf %140, %142 : vector<2x32xf32>
    %151 = arith.addf %149, %150 : vector<2x32xf32>
    %152 = math.tanh %151 : vector<2x32xf32>
    %153 = arith.mulf %152, %148 : vector<2x32xf32>
    %c3_62 = arith.constant 3 : index
    %c0_63 = arith.constant 0 : index
    %c0_64 = arith.constant 0 : index
    %c0_65 = arith.constant 0 : index
    %154 = vector.load %arg6[%c3_62, %c0_63, %c0_64, %c0_65] : memref<8x2x2x32xf32, #tpu.memory_space<vmem>>, vector<1x1x2x32xf32>
    %155 = vector.shape_cast %154 : vector<1x1x2x32xf32> to vector<2x32xf32>
    %156 = vector.shape_cast %151 : vector<2x32xf32> to vector<1x1x2x32xf32>
    tpu.vector_store %arg6[%c3_62, %c0_63, %c0_64, %c0_65], %156 {strides = array<i32>} : memref<8x2x2x32xf32, #tpu.memory_space<vmem>>, vector<1x1x2x32xf32>,
    %c3_66 = arith.constant 3 : index
    %c1_67 = arith.constant 1 : index
    %c0_68 = arith.constant 0 : index
    %c0_69 = arith.constant 0 : index
    %157 = vector.load %arg6[%c3_66, %c1_67, %c0_68, %c0_69] : memref<8x2x2x32xf32, #tpu.memory_space<vmem>>, vector<1x1x2x32xf32>
    %158 = vector.shape_cast %157 : vector<1x1x2x32xf32> to vector<2x32xf32>
    %159 = vector.shape_cast %153 : vector<2x32xf32> to vector<1x1x2x32xf32>
    tpu.vector_store %arg6[%c3_66, %c1_67, %c0_68, %c0_69], %159 {strides = array<i32>} : memref<8x2x2x32xf32, #tpu.memory_space<vmem>>, vector<1x1x2x32xf32>,
    %c0_70 = arith.constant 0 : index
    %c4 = arith.constant 4 : index
    %c0_71 = arith.constant 0 : index
    %160 = vector.load %arg2[%c0_70, %c4, %c0_71] : memref<2x8x4xf32, #tpu.memory_space<vmem>>, vector<2x1x4xf32>
    %161 = vector.shape_cast %160 : vector<2x1x4xf32> to vector<2x4xf32>
    %cst_72 = arith.constant dense<0.000000e+00> : vector<2x128xf32>
    %162 = tpu.matmul %161, %3, %cst_72 {dimension_numbers = #tpu.dot_dimension_numbers<[1], [0], [0], [1], [0, 0, 1, 1], [], []>} : vector<2x4xf32>, vector<4x128xf32>, vector<2x128xf32> -> vector<2x128xf32>
    %cst_73 = arith.constant dense<0.000000e+00> : vector<2x128xf32>
    %163 = tpu.matmul %153, %4, %cst_73 {dimension_numbers = #tpu.dot_dimension_numbers<[1], [0], [0], [1], [0, 0, 1, 1], [], []>} : vector<2x32xf32>, vector<32x128xf32>, vector<2x128xf32> -> vector<2x128xf32>
    %164 = arith.addf %162, %163 : vector<2x128xf32>
    %165 = vector.broadcast %5 : vector<1x128xf32> to vector<2x128xf32>
    %166 = arith.addf %164, %165 : vector<2x128xf32>
    %167 = vector.extract_strided_slice %166 {offsets = [0, 0], sizes = [2, 32], strides = [1, 1]} : vector<2x128xf32> to vector<2x32xf32>
    %168 = arith.negf %167 : vector<2x32xf32>
    %169 = math.exp %168 : vector<2x32xf32>
    %cst_74 = arith.constant 1.000000e+00 : f32
    %170 = vector.broadcast %cst_74 : f32 to vector<2x32xf32>
    %171 = arith.addf %170, %169 : vector<2x32xf32>
    %172 = arith.divf %170, %171 : vector<2x32xf32>
    %173 = vector.extract_strided_slice %166 {offsets = [0, 32], sizes = [2, 32], strides = [1, 1]} : vector<2x128xf32> to vector<2x32xf32>
    %174 = arith.negf %173 : vector<2x32xf32>
    %175 = math.exp %174 : vector<2x32xf32>
    %cst_75 = arith.constant 1.000000e+00 : f32
    %176 = vector.broadcast %cst_75 : f32 to vector<2x32xf32>
    %177 = arith.addf %176, %175 : vector<2x32xf32>
    %178 = arith.divf %176, %177 : vector<2x32xf32>
    %179 = vector.extract_strided_slice %166 {offsets = [0, 64], sizes = [2, 32], strides = [1, 1]} : vector<2x128xf32> to vector<2x32xf32>
    %180 = math.tanh %179 : vector<2x32xf32>
    %181 = vector.extract_strided_slice %166 {offsets = [0, 96], sizes = [2, 32], strides = [1, 1]} : vector<2x128xf32> to vector<2x32xf32>
    %182 = arith.negf %181 : vector<2x32xf32>
    %183 = math.exp %182 : vector<2x32xf32>
    %cst_76 = arith.constant 1.000000e+00 : f32
    %184 = vector.broadcast %cst_76 : f32 to vector<2x32xf32>
    %185 = arith.addf %184, %183 : vector<2x32xf32>
    %186 = arith.divf %184, %185 : vector<2x32xf32>
    %187 = arith.mulf %172, %151 : vector<2x32xf32>
    %188 = arith.mulf %178, %180 : vector<2x32xf32>
    %189 = arith.addf %187, %188 : vector<2x32xf32>
    %190 = math.tanh %189 : vector<2x32xf32>
    %191 = arith.mulf %190, %186 : vector<2x32xf32>
    %c4_77 = arith.constant 4 : index
    %c0_78 = arith.constant 0 : index
    %c0_79 = arith.constant 0 : index
    %c0_80 = arith.constant 0 : index
    %192 = vector.load %arg6[%c4_77, %c0_78, %c0_79, %c0_80] : memref<8x2x2x32xf32, #tpu.memory_space<vmem>>, vector<1x1x2x32xf32>
    %193 = vector.shape_cast %192 : vector<1x1x2x32xf32> to vector<2x32xf32>
    %194 = vector.shape_cast %189 : vector<2x32xf32> to vector<1x1x2x32xf32>
    tpu.vector_store %arg6[%c4_77, %c0_78, %c0_79, %c0_80], %194 {strides = array<i32>} : memref<8x2x2x32xf32, #tpu.memory_space<vmem>>, vector<1x1x2x32xf32>,
    %c4_81 = arith.constant 4 : index
    %c1_82 = arith.constant 1 : index
    %c0_83 = arith.constant 0 : index
    %c0_84 = arith.constant 0 : index
    %195 = vector.load %arg6[%c4_81, %c1_82, %c0_83, %c0_84] : memref<8x2x2x32xf32, #tpu.memory_space<vmem>>, vector<1x1x2x32xf32>
    %196 = vector.shape_cast %195 : vector<1x1x2x32xf32> to vector<2x32xf32>
    %197 = vector.shape_cast %191 : vector<2x32xf32> to vector<1x1x2x32xf32>
    tpu.vector_store %arg6[%c4_81, %c1_82, %c0_83, %c0_84], %197 {strides = array<i32>} : memref<8x2x2x32xf32, #tpu.memory_space<vmem>>, vector<1x1x2x32xf32>,
    %c0_85 = arith.constant 0 : index
    %c5 = arith.constant 5 : index
    %c0_86 = arith.constant 0 : index
    %198 = vector.load %arg2[%c0_85, %c5, %c0_86] : memref<2x8x4xf32, #tpu.memory_space<vmem>>, vector<2x1x4xf32>
    %199 = vector.shape_cast %198 : vector<2x1x4xf32> to vector<2x4xf32>
    %cst_87 = arith.constant dense<0.000000e+00> : vector<2x128xf32>
    %200 = tpu.matmul %199, %3, %cst_87 {dimension_numbers = #tpu.dot_dimension_numbers<[1], [0], [0], [1], [0, 0, 1, 1], [], []>} : vector<2x4xf32>, vector<4x128xf32>, vector<2x128xf32> -> vector<2x128xf32>
    %cst_88 = arith.constant dense<0.000000e+00> : vector<2x128xf32>
    %201 = tpu.matmul %191, %4, %cst_88 {dimension_numbers = #tpu.dot_dimension_numbers<[1], [0], [0], [1], [0, 0, 1, 1], [], []>} : vector<2x32xf32>, vector<32x128xf32>, vector<2x128xf32> -> vector<2x128xf32>
    %202 = arith.addf %200, %201 : vector<2x128xf32>
    %203 = vector.broadcast %5 : vector<1x128xf32> to vector<2x128xf32>
    %204 = arith.addf %202, %203 : vector<2x128xf32>
    %205 = vector.extract_strided_slice %204 {offsets = [0, 0], sizes = [2, 32], strides = [1, 1]} : vector<2x128xf32> to vector<2x32xf32>
    %206 = arith.negf %205 : vector<2x32xf32>
    %207 = math.exp %206 : vector<2x32xf32>
    %cst_89 = arith.constant 1.000000e+00 : f32
    %208 = vector.broadcast %cst_89 : f32 to vector<2x32xf32>
    %209 = arith.addf %208, %207 : vector<2x32xf32>
    %210 = arith.divf %208, %209 : vector<2x32xf32>
    %211 = vector.extract_strided_slice %204 {offsets = [0, 32], sizes = [2, 32], strides = [1, 1]} : vector<2x128xf32> to vector<2x32xf32>
    %212 = arith.negf %211 : vector<2x32xf32>
    %213 = math.exp %212 : vector<2x32xf32>
    %cst_90 = arith.constant 1.000000e+00 : f32
    %214 = vector.broadcast %cst_90 : f32 to vector<2x32xf32>
    %215 = arith.addf %214, %213 : vector<2x32xf32>
    %216 = arith.divf %214, %215 : vector<2x32xf32>
    %217 = vector.extract_strided_slice %204 {offsets = [0, 64], sizes = [2, 32], strides = [1, 1]} : vector<2x128xf32> to vector<2x32xf32>
    %218 = math.tanh %217 : vector<2x32xf32>
    %219 = vector.extract_strided_slice %204 {offsets = [0, 96], sizes = [2, 32], strides = [1, 1]} : vector<2x128xf32> to vector<2x32xf32>
    %220 = arith.negf %219 : vector<2x32xf32>
    %221 = math.exp %220 : vector<2x32xf32>
    %cst_91 = arith.constant 1.000000e+00 : f32
    %222 = vector.broadcast %cst_91 : f32 to vector<2x32xf32>
    %223 = arith.addf %222, %221 : vector<2x32xf32>
    %224 = arith.divf %222, %223 : vector<2x32xf32>
    %225 = arith.mulf %210, %189 : vector<2x32xf32>
    %226 = arith.mulf %216, %218 : vector<2x32xf32>
    %227 = arith.addf %225, %226 : vector<2x32xf32>
    %228 = math.tanh %227 : vector<2x32xf32>
    %229 = arith.mulf %228, %224 : vector<2x32xf32>
    %c5_92 = arith.constant 5 : index
    %c0_93 = arith.constant 0 : index
    %c0_94 = arith.constant 0 : index
    %c0_95 = arith.constant 0 : index
    %230 = vector.load %arg6[%c5_92, %c0_93, %c0_94, %c0_95] : memref<8x2x2x32xf32, #tpu.memory_space<vmem>>, vector<1x1x2x32xf32>
    %231 = vector.shape_cast %230 : vector<1x1x2x32xf32> to vector<2x32xf32>
    %232 = vector.shape_cast %227 : vector<2x32xf32> to vector<1x1x2x32xf32>
    tpu.vector_store %arg6[%c5_92, %c0_93, %c0_94, %c0_95], %232 {strides = array<i32>} : memref<8x2x2x32xf32, #tpu.memory_space<vmem>>, vector<1x1x2x32xf32>,
    %c5_96 = arith.constant 5 : index
    %c1_97 = arith.constant 1 : index
    %c0_98 = arith.constant 0 : index
    %c0_99 = arith.constant 0 : index
    %233 = vector.load %arg6[%c5_96, %c1_97, %c0_98, %c0_99] : memref<8x2x2x32xf32, #tpu.memory_space<vmem>>, vector<1x1x2x32xf32>
    %234 = vector.shape_cast %233 : vector<1x1x2x32xf32> to vector<2x32xf32>
    %235 = vector.shape_cast %229 : vector<2x32xf32> to vector<1x1x2x32xf32>
    tpu.vector_store %arg6[%c5_96, %c1_97, %c0_98, %c0_99], %235 {strides = array<i32>} : memref<8x2x2x32xf32, #tpu.memory_space<vmem>>, vector<1x1x2x32xf32>,
    %c0_100 = arith.constant 0 : index
    %c6 = arith.constant 6 : index
    %c0_101 = arith.constant 0 : index
    %236 = vector.load %arg2[%c0_100, %c6, %c0_101] : memref<2x8x4xf32, #tpu.memory_space<vmem>>, vector<2x1x4xf32>
    %237 = vector.shape_cast %236 : vector<2x1x4xf32> to vector<2x4xf32>
    %cst_102 = arith.constant dense<0.000000e+00> : vector<2x128xf32>
    %238 = tpu.matmul %237, %3, %cst_102 {dimension_numbers = #tpu.dot_dimension_numbers<[1], [0], [0], [1], [0, 0, 1, 1], [], []>} : vector<2x4xf32>, vector<4x128xf32>, vector<2x128xf32> -> vector<2x128xf32>
    %cst_103 = arith.constant dense<0.000000e+00> : vector<2x128xf32>
    %239 = tpu.matmul %229, %4, %cst_103 {dimension_numbers = #tpu.dot_dimension_numbers<[1], [0], [0], [1], [0, 0, 1, 1], [], []>} : vector<2x32xf32>, vector<32x128xf32>, vector<2x128xf32> -> vector<2x128xf32>
    %240 = arith.addf %238, %239 : vector<2x128xf32>
    %241 = vector.broadcast %5 : vector<1x128xf32> to vector<2x128xf32>
    %242 = arith.addf %240, %241 : vector<2x128xf32>
    %243 = vector.extract_strided_slice %242 {offsets = [0, 0], sizes = [2, 32], strides = [1, 1]} : vector<2x128xf32> to vector<2x32xf32>
    %244 = arith.negf %243 : vector<2x32xf32>
    %245 = math.exp %244 : vector<2x32xf32>
    %cst_104 = arith.constant 1.000000e+00 : f32
    %246 = vector.broadcast %cst_104 : f32 to vector<2x32xf32>
    %247 = arith.addf %246, %245 : vector<2x32xf32>
    %248 = arith.divf %246, %247 : vector<2x32xf32>
    %249 = vector.extract_strided_slice %242 {offsets = [0, 32], sizes = [2, 32], strides = [1, 1]} : vector<2x128xf32> to vector<2x32xf32>
    %250 = arith.negf %249 : vector<2x32xf32>
    %251 = math.exp %250 : vector<2x32xf32>
    %cst_105 = arith.constant 1.000000e+00 : f32
    %252 = vector.broadcast %cst_105 : f32 to vector<2x32xf32>
    %253 = arith.addf %252, %251 : vector<2x32xf32>
    %254 = arith.divf %252, %253 : vector<2x32xf32>
    %255 = vector.extract_strided_slice %242 {offsets = [0, 64], sizes = [2, 32], strides = [1, 1]} : vector<2x128xf32> to vector<2x32xf32>
    %256 = math.tanh %255 : vector<2x32xf32>
    %257 = vector.extract_strided_slice %242 {offsets = [0, 96], sizes = [2, 32], strides = [1, 1]} : vector<2x128xf32> to vector<2x32xf32>
    %258 = arith.negf %257 : vector<2x32xf32>
    %259 = math.exp %258 : vector<2x32xf32>
    %cst_106 = arith.constant 1.000000e+00 : f32
    %260 = vector.broadcast %cst_106 : f32 to vector<2x32xf32>
    %261 = arith.addf %260, %259 : vector<2x32xf32>
    %262 = arith.divf %260, %261 : vector<2x32xf32>
    %263 = arith.mulf %248, %227 : vector<2x32xf32>
    %264 = arith.mulf %254, %256 : vector<2x32xf32>
    %265 = arith.addf %263, %264 : vector<2x32xf32>
    %266 = math.tanh %265 : vector<2x32xf32>
    %267 = arith.mulf %266, %262 : vector<2x32xf32>
    %c6_107 = arith.constant 6 : index
    %c0_108 = arith.constant 0 : index
    %c0_109 = arith.constant 0 : index
    %c0_110 = arith.constant 0 : index
    %268 = vector.load %arg6[%c6_107, %c0_108, %c0_109, %c0_110] : memref<8x2x2x32xf32, #tpu.memory_space<vmem>>, vector<1x1x2x32xf32>
    %269 = vector.shape_cast %268 : vector<1x1x2x32xf32> to vector<2x32xf32>
    %270 = vector.shape_cast %265 : vector<2x32xf32> to vector<1x1x2x32xf32>
    tpu.vector_store %arg6[%c6_107, %c0_108, %c0_109, %c0_110], %270 {strides = array<i32>} : memref<8x2x2x32xf32, #tpu.memory_space<vmem>>, vector<1x1x2x32xf32>,
    %c6_111 = arith.constant 6 : index
    %c1_112 = arith.constant 1 : index
    %c0_113 = arith.constant 0 : index
    %c0_114 = arith.constant 0 : index
    %271 = vector.load %arg6[%c6_111, %c1_112, %c0_113, %c0_114] : memref<8x2x2x32xf32, #tpu.memory_space<vmem>>, vector<1x1x2x32xf32>
    %272 = vector.shape_cast %271 : vector<1x1x2x32xf32> to vector<2x32xf32>
    %273 = vector.shape_cast %267 : vector<2x32xf32> to vector<1x1x2x32xf32>
    tpu.vector_store %arg6[%c6_111, %c1_112, %c0_113, %c0_114], %273 {strides = array<i32>} : memref<8x2x2x32xf32, #tpu.memory_space<vmem>>, vector<1x1x2x32xf32>,
    %c0_115 = arith.constant 0 : index
    %c7 = arith.constant 7 : index
    %c0_116 = arith.constant 0 : index
    %274 = vector.load %arg2[%c0_115, %c7, %c0_116] : memref<2x8x4xf32, #tpu.memory_space<vmem>>, vector<2x1x4xf32>
    %275 = vector.shape_cast %274 : vector<2x1x4xf32> to vector<2x4xf32>
    %cst_117 = arith.constant dense<0.000000e+00> : vector<2x128xf32>
    %276 = tpu.matmul %275, %3, %cst_117 {dimension_numbers = #tpu.dot_dimension_numbers<[1], [0], [0], [1], [0, 0, 1, 1], [], []>} : vector<2x4xf32>, vector<4x128xf32>, vector<2x128xf32> -> vector<2x128xf32>
    %cst_118 = arith.constant dense<0.000000e+00> : vector<2x128xf32>
    %277 = tpu.matmul %267, %4, %cst_118 {dimension_numbers = #tpu.dot_dimension_numbers<[1], [0], [0], [1], [0, 0, 1, 1], [], []>} : vector<2x32xf32>, vector<32x128xf32>, vector<2x128xf32> -> vector<2x128xf32>
    %278 = arith.addf %276, %277 : vector<2x128xf32>
    %279 = vector.broadcast %5 : vector<1x128xf32> to vector<2x128xf32>
    %280 = arith.addf %278, %279 : vector<2x128xf32>
    %281 = vector.extract_strided_slice %280 {offsets = [0, 0], sizes = [2, 32], strides = [1, 1]} : vector<2x128xf32> to vector<2x32xf32>
    %282 = arith.negf %281 : vector<2x32xf32>
    %283 = math.exp %282 : vector<2x32xf32>
    %cst_119 = arith.constant 1.000000e+00 : f32
    %284 = vector.broadcast %cst_119 : f32 to vector<2x32xf32>
    %285 = arith.addf %284, %283 : vector<2x32xf32>
    %286 = arith.divf %284, %285 : vector<2x32xf32>
    %287 = vector.extract_strided_slice %280 {offsets = [0, 32], sizes = [2, 32], strides = [1, 1]} : vector<2x128xf32> to vector<2x32xf32>
    %288 = arith.negf %287 : vector<2x32xf32>
    %289 = math.exp %288 : vector<2x32xf32>
    %cst_120 = arith.constant 1.000000e+00 : f32
    %290 = vector.broadcast %cst_120 : f32 to vector<2x32xf32>
    %291 = arith.addf %290, %289 : vector<2x32xf32>
    %292 = arith.divf %290, %291 : vector<2x32xf32>
    %293 = vector.extract_strided_slice %280 {offsets = [0, 64], sizes = [2, 32], strides = [1, 1]} : vector<2x128xf32> to vector<2x32xf32>
    %294 = math.tanh %293 : vector<2x32xf32>
    %295 = vector.extract_strided_slice %280 {offsets = [0, 96], sizes = [2, 32], strides = [1, 1]} : vector<2x128xf32> to vector<2x32xf32>
    %296 = arith.negf %295 : vector<2x32xf32>
    %297 = math.exp %296 : vector<2x32xf32>
    %cst_121 = arith.constant 1.000000e+00 : f32
    %298 = vector.broadcast %cst_121 : f32 to vector<2x32xf32>
    %299 = arith.addf %298, %297 : vector<2x32xf32>
    %300 = arith.divf %298, %299 : vector<2x32xf32>
    %301 = arith.mulf %286, %265 : vector<2x32xf32>
    %302 = arith.mulf %292, %294 : vector<2x32xf32>
    %303 = arith.addf %301, %302 : vector<2x32xf32>
    %304 = math.tanh %303 : vector<2x32xf32>
    %305 = arith.mulf %304, %300 : vector<2x32xf32>
    %c7_122 = arith.constant 7 : index
    %c0_123 = arith.constant 0 : index
    %c0_124 = arith.constant 0 : index
    %c0_125 = arith.constant 0 : index
    %306 = vector.load %arg6[%c7_122, %c0_123, %c0_124, %c0_125] : memref<8x2x2x32xf32, #tpu.memory_space<vmem>>, vector<1x1x2x32xf32>
    %307 = vector.shape_cast %306 : vector<1x1x2x32xf32> to vector<2x32xf32>
    %308 = vector.shape_cast %303 : vector<2x32xf32> to vector<1x1x2x32xf32>
    tpu.vector_store %arg6[%c7_122, %c0_123, %c0_124, %c0_125], %308 {strides = array<i32>} : memref<8x2x2x32xf32, #tpu.memory_space<vmem>>, vector<1x1x2x32xf32>,
    %c7_126 = arith.constant 7 : index
    %c1_127 = arith.constant 1 : index
    %c0_128 = arith.constant 0 : index
    %c0_129 = arith.constant 0 : index
    %309 = vector.load %arg6[%c7_126, %c1_127, %c0_128, %c0_129] : memref<8x2x2x32xf32, #tpu.memory_space<vmem>>, vector<1x1x2x32xf32>
    %310 = vector.shape_cast %309 : vector<1x1x2x32xf32> to vector<2x32xf32>
    %311 = vector.shape_cast %305 : vector<2x32xf32> to vector<1x1x2x32xf32>
    tpu.vector_store %arg6[%c7_126, %c1_127, %c0_128, %c0_129], %311 {strides = array<i32>} : memref<8x2x2x32xf32, #tpu.memory_space<vmem>>, vector<1x1x2x32xf32>,
    %c0_130 = arith.constant 0 : index
    %c0_131 = arith.constant 0 : index
    %312 = vector.load %arg7[%c0_130, %c0_131] : memref<2x32xf32, #tpu.memory_space<vmem>>, vector<2x32xf32>
    tpu.vector_store %arg7[%c0_130, %c0_131], %303 {strides = array<i32>} : memref<2x32xf32, #tpu.memory_space<vmem>>, vector<2x32xf32>,
    %c0_132 = arith.constant 0 : index
    %c0_133 = arith.constant 0 : index
    %313 = vector.load %arg8[%c0_132, %c0_133] : memref<2x32xf32, #tpu.memory_space<vmem>>, vector<2x32xf32>
    tpu.vector_store %arg8[%c0_132, %c0_133], %305 {strides = array<i32>} : memref<2x32xf32, #tpu.memory_space<vmem>>, vector<2x32xf32>,
    return
  }
  func.func @transform_0(%arg0: i32, %arg1: i32) -> (i32, i32, i32) {
    %c0_i32 = arith.constant 0 : i32
    %c0_i32_0 = arith.constant 0 : i32
    return %arg0, %arg1, %c0_i32 : i32, i32, i32
  }
  func.func @transform_1(%arg0: i32, %arg1: i32) -> (i32, i32) {
    %c0_i32 = arith.constant 0 : i32
    %c0_i32_0 = arith.constant 0 : i32
    %c0_i32_1 = arith.constant 0 : i32
    return %c0_i32, %c0_i32_0 : i32, i32
  }
  func.func @transform_2(%arg0: i32, %arg1: i32) -> (i32, i32) {
    %c0_i32 = arith.constant 0 : i32
    %c0_i32_0 = arith.constant 0 : i32
    %c0_i32_1 = arith.constant 0 : i32
    return %c0_i32, %c0_i32_0 : i32, i32
  }
  func.func @transform_3(%arg0: i32, %arg1: i32) -> (i32, i32) {
    %c0_i32 = arith.constant 0 : i32
    %c0_i32_0 = arith.constant 0 : i32
    %c0_i32_1 = arith.constant 0 : i32
    return %c0_i32, %c0_i32_0 : i32, i32
  }
  func.func @transform_4(%arg0: i32, %arg1: i32) -> (i32, i32, i32, i32) {
    %c0_i32 = arith.constant 0 : i32
    %c0_i32_0 = arith.constant 0 : i32
    %c0_i32_1 = arith.constant 0 : i32
    return %arg1, %c0_i32, %arg0, %c0_i32_0 : i32, i32, i32, i32
  }
}

</mosaic_0001>

<llo_original>
// kernel: lstm_forward.1
$region0: #{lstm_forward.1}
  #allocation0 [shape = 'u32[]', space=smem, size = 0x4, offset = 0x4, fixed_abs, tag = 'smem constant byte address 0x4 - core index']
  #allocation1 [shape = 'u32[144,128]{1,0:T(1,128)}', space=vmem, size = 0x12000, scoped, tag = 'internal scratch']
  #allocation2 [shape = 'f32[2,32]{1,0:T(2,128)}', space=vmem, size = 0x400, scoped, tag = 'scratch operand']
  #allocation3 [shape = 'f32[2,32]{1,0:T(2,128)}', space=vmem, size = 0x400, scoped, tag = 'scratch operand']
  %s0 = inlined_call_operand.vmem [shape: f32[2,16,4], index: 0, kind: input, shape index: {}]
  %s1 = inlined_call_operand.vmem [shape: f32[4,128], index: 1, kind: input, shape index: {}]
  %s2 = inlined_call_operand.vmem [shape: f32[32,128], index: 2, kind: input, shape index: {}]
  %s3 = inlined_call_operand.vmem [shape: f32[1,128], index: 3, kind: input, shape index: {}]
  %s4 = inlined_call_operand.hbm [shape: f32[16,2,2,32], index: 4, kind: output, shape index: {}]
  %s5 = sld [smem:[#allocation0]]
  $region91: #{lstm_forward.1} parent=0
    _
  %s7 = ssub.s32 1, %s5
  %s8 = scalar_select 0, %s7, %s5
  $region1: #{lstm_forward.1} parent=0
    #allocation4 [shape = 'u8[16384]{0}', space=vmem, size = 0x4000, scoped, tag = 'input window, operand 0']
    #allocation5 [shape = 'u8[32768]{0}', space=vmem, size = 0x8000, scoped, tag = 'output window, operand 0']
    #allocation6 [shape = 's32[2]{0}', space=sflag, size = 0x8, scoped, tag = 'scoped memory for lstm_forward.1']
    %9 = vsyncpa [#allocation6], 0
    %s10 = scalar_lea.sflag [#allocation6], 1
    %11 = vsyncpa %s10, 0
    loop: start=0, step=1, limit=4
    $region2: #{lstm_forward.1} parent=1 // loop_pre_header
      _
    $region3: #{lstm_forward.1} parent=1 // loop_header
      %s13 = sphi 0, %s17
      %p14 = scmp.ge.s32.totalorder %s13, 4
      %s20 = sphi 0, %s32
      %s21 = sphi 0, %s28
      %s22 = sphi 0, %s20
      %s23 = sphi 0, %s21
      %s24 = sphi 0, %s22
      %s25 = sphi 0, %s23
      %s37 = sphi 0, %s39
      %s40 = sphi 0, %s37
      %s41 = sphi 0, %s40
      %s57 = sphi 0, %s41
      %s61 = sphi 0, %s61
      %s63 = sphi 0, %s61
      %s64 = sphi 0, %s63
      %s78 = sphi 0, %s64
      %s82 = sphi 0, %s82
      %s84 = sphi 0, %s82
      %s85 = sphi 0, %s84
      %s99 = sphi 0, %s85
      %s103 = sphi 0, %s103
      %s105 = sphi 0, %s103
      %s106 = sphi 0, %s105
      %s120 = sphi 0, %s106
      %s128 = sphi 0, %s130
      %s131 = sphi 0, %s128
      %s132 = sphi 0, %s131
      %s148 = sphi 0, %s132
    $region4: #{lstm_forward.1} parent=1 // loop_header_branch
      %16 = sbr.rel (%p14) target = $region8
    $region5: #{lstm_forward.1} parent=1 // loop_body
      %s18 = ssub.s32 %s13, 1
      %s19 = ssub.s32 %s13, 2
      %s26 = sadd.s32 1, %s21
      %p27 = scmp.ge.s32.totalorder %s26, 2
      %s28 = scalar_select %p27, 0, %s26
      %s29 = sadd.s32 1, %s20
      %s30 = scalar_select %p27, %s29, %s20
      %p31 = scmp.ge.s32.totalorder %s30, 1
      %s32 = scalar_select %p31, 0, %s30
      %s33 = ssub.s32 %s20, %s32
      %s34 = ssub.s32 %s21, %s28
      %s35 = sor.u32 %s33, %s34
      %p36 = scmp.eq.s32.totalorder %s35, 0
      %s38 = sadd.s32 %s37, 1
      %s39 = scalar_select %p36, %s37, %s38
      %p42 = pneg %p36
      %p43 = scmp.eq.s32.totalorder %s13, 1
      %p44 = por %p42, %p43
      %p45 = scmp.ne.s32.totalorder %s37, %s40
      %p46 = scmp.eq.s32.totalorder %s13, 0
      %p47 = por %p45, %p46
      %p48 = scmp.ne.s32.totalorder %s37, %s40
      %p49 = scmp.eq.s32.totalorder %s18, 1
      %p50 = por %p48, %p49
      %p51 = scmp.ne.s32.totalorder %s40, %s41
      %p52 = scmp.eq.s32.totalorder %s18, 0
      %p53 = por %p51, %p52
      %p54 = scmp.ne.s32.totalorder %s40, %s41
      %p55 = scmp.eq.s32.totalorder %s19, 1
      %p56 = por %p54, %p55
      %p58 = scmp.ne.s32.totalorder %s41, %s57
      %p59 = scmp.eq.s32.totalorder %s19, 0
      %p60 = por %p58, %p59
      %s62 = sadd.s32 %s61, 1
      %p65 = scmp.eq.s32.totalorder %s13, 1
      %p66 = scmp.ne.s32.totalorder %s61, %s63
      %p67 = scmp.eq.s32.totalorder %s13, 0
      %p68 = por %p66, %p67
      %p69 = scmp.ne.s32.totalorder %s61, %s63
      %p70 = scmp.eq.s32.totalorder %s18, 1
      %p71 = por %p69, %p70
      %p72 = scmp.ne.s32.totalorder %s63, %s64
      %p73 = scmp.eq.s32.totalorder %s18, 0
      %p74 = por %p72, %p73
      %p75 = scmp.ne.s32.totalorder %s63, %s64
      %p76 = scmp.eq.s32.totalorder %s19, 1
      %p77 = por %p75, %p76
      %p79 = scmp.ne.s32.totalorder %s64, %s78
      %p80 = scmp.eq.s32.totalorder %s19, 0
      %p81 = por %p79, %p80
      %s83 = sadd.s32 %s82, 1
      %p86 = scmp.eq.s32.totalorder %s13, 1
      %p87 = scmp.ne.s32.totalorder %s82, %s84
      %p88 = scmp.eq.s32.totalorder %s13, 0
      %p89 = por %p87, %p88
      %p90 = scmp.ne.s32.totalorder %s82, %s84
      %p91 = scmp.eq.s32.totalorder %s18, 1
      %p92 = por %p90, %p91
      %p93 = scmp.ne.s32.totalorder %s84, %s85
      %p94 = scmp.eq.s32.totalorder %s18, 0
      %p95 = por %p93, %p94
      %p96 = scmp.ne.s32.totalorder %s84, %s85
      %p97 = scmp.eq.s32.totalorder %s19, 1
      %p98 = por %p96, %p97
      %p100 = scmp.ne.s32.totalorder %s85, %s99
      %p101 = scmp.eq.s32.totalorder %s19, 0
      %p102 = por %p100, %p101
      %s104 = sadd.s32 %s103, 1
      %p107 = scmp.eq.s32.totalorder %s13, 1
      %p108 = scmp.ne.s32.totalorder %s103, %s105
      %p109 = scmp.eq.s32.totalorder %s13, 0
      %p110 = por %p108, %p109
      %p111 = scmp.ne.s32.totalorder %s103, %s105
      %p112 = scmp.eq.s32.totalorder %s18, 1
      %p113 = por %p111, %p112
      %p114 = scmp.ne.s32.totalorder %s105, %s106
      %p115 = scmp.eq.s32.totalorder %s18, 0
      %p116 = por %p114, %p115
      %p117 = scmp.ne.s32.totalorder %s105, %s106
      %p118 = scmp.eq.s32.totalorder %s19, 1
      %p119 = por %p117, %p118
      %p121 = scmp.ne.s32.totalorder %s106, %s120
      %p122 = scmp.eq.s32.totalorder %s19, 0
      %p123 = por %p121, %p122
      %s124 = ssub.s32 %s21, %s28
      %s125 = ssub.s32 %s20, %s32
      %s126 = sor.u32 %s124, %s125
      %p127 = scmp.eq.s32.totalorder %s126, 0
      %s129 = sadd.s32 %s128, 1
      %s130 = scalar_select %p127, %s128, %s129
      %p133 = pneg %p127
      %p134 = scmp.eq.s32.totalorder %s13, 1
      %p135 = por %p133, %p134
      %p136 = scmp.ne.s32.totalorder %s128, %s131
      %p137 = scmp.eq.s32.totalorder %s13, 0
      %p138 = por %p136, %p137
      %p139 = scmp.ne.s32.totalorder %s128, %s131
      %p140 = scmp.eq.s32.totalorder %s18, 1
      %p141 = por %p139, %p140
      %p142 = scmp.ne.s32.totalorder %s131, %s132
      %p143 = scmp.eq.s32.totalorder %s18, 0
      %p144 = por %p142, %p143
      %p145 = scmp.ne.s32.totalorder %s131, %s132
      %p146 = scmp.eq.s32.totalorder %s19, 1
      %p147 = por %p145, %p146
      %p149 = scmp.ne.s32.totalorder %s132, %s148
      %p150 = scmp.eq.s32.totalorder %s19, 0
      %p151 = por %p149, %p150
      %p152 = scmp.le.s32.totalorder 1, %s13
      %p153 = scmp.lt.s32.totalorder %s13, 3
      %p154 = pnand %p152, %p153
      %p155 = pneg %p154
      // Predicated region
      $region9: #{lstm_forward.1} parent=5 // pred_check
        _
      $region10: #{lstm_forward.1} parent=5 // pred_check_branch
        %157 = sbr.rel (%p154) target = $region12
      $region11: #{lstm_forward.1} parent=5 // pred_region
        %s158 = ssub.s32 %s13, 1
        // Predicated region
        $region13: #{lstm_forward.1} parent=11 // pred_check
          %p159 = pneg %p74
        $region14: #{lstm_forward.1} parent=11 // pred_check_branch
          %161 = sbr.rel (%p159) target = $region16
        $region15: #{lstm_forward.1} parent=11 // pred_region
          _
        $region16: #{lstm_forward.1} parent=11 // pred_fallthru
          _
        // Predicated region
        $region17: #{lstm_forward.1} parent=11 // pred_check
          %p162 = pneg %p95
        $region18: #{lstm_forward.1} parent=11 // pred_check_branch
          %164 = sbr.rel (%p162) target = $region20
        $region19: #{lstm_forward.1} parent=11 // pred_region
          _
        $region20: #{lstm_forward.1} parent=11 // pred_fallthru
          _
        // Predicated region
        $region21: #{lstm_forward.1} parent=11 // pred_check
          %p165 = pneg %p116
        $region22: #{lstm_forward.1} parent=11 // pred_check_branch
          %167 = sbr.rel (%p165) target = $region24
        $region23: #{lstm_forward.1} parent=11 // pred_region
          _
        $region24: #{lstm_forward.1} parent=11 // pred_fallthru
          _
      $region12: #{lstm_forward.1} parent=5 // pred_fallthru
        _
      %p168 = scmp.lt.s32.totalorder %s13, 2
      // Predicated region
      $region25: #{lstm_forward.1} parent=5 // pred_check
        %p169 = pneg %p168
      $region26: #{lstm_forward.1} parent=5 // pred_check_branch
        %171 = sbr.rel (%p169) target = $region28
      $region27: #{lstm_forward.1} parent=5 // pred_region
        // Predicated region
        $region29: #{lstm_forward.1} parent=27 // pred_check
          %p172 = pneg %p47
        $region30: #{lstm_forward.1} parent=27 // pred_check_branch
          %174 = sbr.rel (%p172) target = $region32
        $region31: #{lstm_forward.1} parent=27 // pred_region
          %s175 = sand.u32 %s37, 1
          %s176 = sand.u32 %s37, 1
          %s177 = smul.addr %s176, 16
          %s178 = scalar_lea.vmem [#allocation4], %s177
          %s179 = smul.u32 2, %s20
          %s180 = smul.addr %s179, 2
          %s181 = sadd.s32 %s21, %s180
          %s182 = smul.addr %s181, 8
          %s183 = scalar_lea.vmem %s0, %s182
          // Predicated region
          $region33: #{lstm_forward.1} parent=31 // pred_check
            _
          $region34: #{lstm_forward.1} parent=31 // pred_check_branch
            %185 = sbr.rel (0) target = $region36
          $region35: #{lstm_forward.1} parent=31 // pred_region
            // Predicated region
            $region37: #{lstm_forward.1} parent=35 // pred_check
              _
            $region38: #{lstm_forward.1} parent=35 // pred_check_branch
              %187 = sbr.rel (0) target = $region40
            $region39: #{lstm_forward.1} parent=35 // pred_region
              // Predicated region
              $region52: #{lstm_forward.1} parent=39 // pred_check
                _
              $region53: #{lstm_forward.1} parent=39 // pred_check_branch
                %204 = sbr.rel (0) target = $region55
              $region54: #{lstm_forward.1} parent=39 // pred_region
                loop: start=0, step=1, limit=1
                $region56: #{lstm_forward.1} parent=54 // loop_pre_header
                  _
                $region57: #{lstm_forward.1} parent=54 // loop_header
                  %s206 = sphi 0, %s210
                  %p207 = scmp.ge.s32.totalorder %s206, 1
                  %s211 = sphi %s183, %s183
                  %s212 = sphi %s178, %s178
                $region58: #{lstm_forward.1} parent=54 // loop_header_branch
                  %209 = sbr.rel (%p207) target = $region62
                $region59: #{lstm_forward.1} parent=54 // loop_body
                  %v213 = vld [vmem:[%s211] sm:$0xff]
                  %214 = vst [vmem:[%s212] sm:$0xff] %v213
                  %v215 = vld [vmem:[%s211 + $0x10] sm:$0xff]
                  %216 = vst [vmem:[%s212 + $0x8] sm:$0xff] %v215
                $region60: #{lstm_forward.1} parent=54 // loop_footer
                  %s210 = sadd.s32 1, %s206
                $region61: #{lstm_forward.1} parent=54 // loop_footer_branch
                  %205 = sbr.rel target = $region57
                $region62: #{lstm_forward.1} parent=54 // loop_exit
                  _
              $region55: #{lstm_forward.1} parent=39 // pred_fallthru
                _
              // Predicated region
              $region63: #{lstm_forward.1} parent=39 // pred_check
                _
              $region64: #{lstm_forward.1} parent=39 // pred_check_branch
                %218 = sbr.rel target = $region66
              $region65: #{lstm_forward.1} parent=39 // pred_region
                _
              $region66: #{lstm_forward.1} parent=39 // pred_fallthru
                _
            $region40: #{lstm_forward.1} parent=35 // pred_fallthru
              _
            // Predicated region
            $region41: #{lstm_forward.1} parent=35 // pred_check
              _
            $region42: #{lstm_forward.1} parent=35 // pred_check_branch
              %189 = sbr.rel target = $region44
            $region43: #{lstm_forward.1} parent=35 // pred_region
              loop: start=0, step=1, limit=1
              $region45: #{lstm_forward.1} parent=43 // loop_pre_header
                _
              $region46: #{lstm_forward.1} parent=43 // loop_header
                %s192 = sphi 0, %s196
                %p193 = scmp.ge.s32.totalorder %s192, 1
                %s197 = sphi %s183, %s183
                %s198 = sphi %s178, %s178
              $region47: #{lstm_forward.1} parent=43 // loop_header_branch
                %195 = sbr.rel (%p193) target = $region51
              $region48: #{lstm_forward.1} parent=43 // loop_body
                %v199 = vld [vmem:[%s197] sm:$0xff]
                %200 = vst [vmem:[%s198] sm:$0xff] %v199
                %v201 = vld [vmem:[%s197 + $0x10] sm:$0xff]
                %202 = vst [vmem:[%s198 + $0x8] sm:$0xff] %v201
              $region49: #{lstm_forward.1} parent=43 // loop_footer
                %s196 = sadd.s32 1, %s192
              $region50: #{lstm_forward.1} parent=43 // loop_footer_branch
                %191 = sbr.rel target = $region46
              $region51: #{lstm_forward.1} parent=43 // loop_exit
                _
            $region44: #{lstm_forward.1} parent=35 // pred_fallthru
              _
          $region36: #{lstm_forward.1} parent=31 // pred_fallthru
            _
          %219 = vnop
        $region32: #{lstm_forward.1} parent=27 // pred_fallthru
          _
      $region28: #{lstm_forward.1} parent=5 // pred_fallthru
        _
      %p220 = scmp.le.s32.totalorder 1, %s13
      %p221 = scmp.lt.s32.totalorder %s13, 3
      %p222 = pnand %p220, %p221
      %p223 = pneg %p222
      // Predicated region
      $region67: #{lstm_forward.1} parent=5 // pred_check
        _
      $region68: #{lstm_forward.1} parent=5 // pred_check_branch
        %225 = sbr.rel (%p222) target = $region70
      $region69: #{lstm_forward.1} parent=5 // pred_region
        %s226 = ssub.s32 %s13, 1
        %s227 = sand.u32 %s40, 1
        %s228 = sand.u32 %s40, 1
        %s229 = smul.addr %s228, 16
        %s230 = scalar_lea.vmem [#allocation4], %s229
        // Predicated region
        $region71: #{lstm_forward.1} parent=69 // pred_check
          %p231 = pneg %p53
        $region72: #{lstm_forward.1} parent=69 // pred_check_branch
          %233 = sbr.rel (%p231) target = $region74
        $region73: #{lstm_forward.1} parent=69 // pred_region
          _
        $region74: #{lstm_forward.1} parent=69 // pred_fallthru
          _
        %s234 = sand.u32 %s40, 1
        %s235 = sand.u32 %s40, 1
        %s236 = smul.addr %s235, 16
        %s237 = scalar_lea.vmem [#allocation4], %s236
        %p238 = pneg %p53
        %p239 = pneg %p50
        %p240 = pneg %p74
        %p241 = pneg %p71
        %p242 = pneg %p95
        %p243 = pneg %p92
        %p244 = pneg %p116
        %p245 = pneg %p113
        %p246 = pneg %p144
        %p247 = pneg %p141
        %s248 = sand.u32 %s131, 1
        %s249 = scalar_lea.sflag [#allocation6], %s248
        %s250 = sand.u32 %s131, 1
        %s251 = smul.addr %s250, 32
        %s252 = scalar_lea.vmem [#allocation5], %s251
        %s253 = smul.u32 2, %s22
        %s254 = smul.u32 8, %s23
        %p255 = scmp.eq.s32.totalorder %s23, 0
        // Predicated region
        $region75: #{lstm_forward.1} parent=69 // pred_check
          %p256 = pneg %p255
        $region76: #{lstm_forward.1} parent=69 // pred_check_branch
          %258 = sbr.rel (%p256) target = $region78
        $region77: #{lstm_forward.1} parent=69 // pred_region
          %vm259 = vcmask 254976
          %260 = vst.msk [vmem:[#allocation2] sm:$0x3] %vm259, 0.0
          %261 = vst.msk [vmem:[#allocation3] sm:$0x3] %vm259, 0.0
        $region78: #{lstm_forward.1} parent=69 // pred_fallthru
          _
        %v262 = vld [vmem:[%s1] sm:$0xf]
        %v263 = vld [vmem:[%s2] sm:$0xff]
        %v264 = vld [vmem:[%s2 + $0x8] sm:$0xff]
        %v265 = vld [vmem:[%s2 + $0x10] sm:$0xff]
        %v266 = vld [vmem:[%s2 + $0x18] sm:$0xff]
        %v267 = vld [vmem:[%s3] sm:$0x1]
        %v268 = vld [vmem:[#allocation2] sm:$0x3]
        %v269 = vld [vmem:[#allocation3] sm:$0x3]
        %v270 = vld [vmem:[%s230] sm:$0x1]
        %v271 = vld [vmem:[%s230 + $0x8] sm:$0x1]
        %vm272 = vcmask 261120
        %v274 = vsel %vm272, %v269, 0
        %276 = vmatprep.subr.mxu0 0.0
        %277 = vmatpush1.msra.mxu0 %v263
        %278 = vmatprep.subr.mxu0 0.0
        %279 = vmatpush1.msra.mxu0 %v264
        %280 = vmatprep.subr.mxu0 0.0
        %281 = vmatpush1.msra.mxu0 %v265
        %282 = vmatprep.subr.mxu0 0.0
        %283 = vmatpush1.msra.mxu0 %v266
        %284 = vmatprep.subr.mxu0 0.0
        %285 = vmatpush1.msra.mxu0 0.0
        %286 = vmatprep.subr.mxu0 0.0
        %287 = vmatpush1.msra.mxu0 0.0
        %288 = vmatprep.subr.mxu0 0.0
        %289 = vmatpush1.msra.mxu0 0.0
        %290 = vmatprep.subr.mxu0 0.0
        %291 = vmatpush1.msra.mxu0 0.0
        %292 = vmatprep.subr.mxu0 0.0
        %293 = vmatpush1.msra.mxu0 0.0
        %294 = vmatprep.subr.mxu0 0.0
        %295 = vmatpush1.msra.mxu0 0.0
        %296 = vmatprep.subr.mxu0 0.0
        %297 = vmatpush1.msra.mxu0 0.0
        %298 = vmatprep.subr.mxu0 0.0
        %299 = vmatpush1.msra.mxu0 0.0
        %300 = vmatprep.subr.mxu0 0.0
        %301 = vmatpush1.msra.mxu0 0.0
        %302 = vmatprep.subr.mxu0 0.0
        %303 = vmatpush1.msra.mxu0 0.0
        %304 = vmatprep.subr.mxu0 0.0
        %305 = vmatpush1.msra.mxu0 0.0
        %306 = vmatprep.subr.mxu0 0.0
        %307 = vmatpush1.msra.mxu0 0.0
        %308 = vmatprep.subr.mxu0 0.0
        %309 = vmatpush1.msra.mxu0 0.0
        %310 = vmatprep.subr.mxu0 0.0
        %311 = vmatpush1.msra.mxu0 0.0
        %312 = vmatprep.subr.mxu0 0.0
        %313 = vmatpush1.msra.mxu0 0.0
        %314 = vmatprep.subr.mxu0 0.0
        %315 = vmatpush1.msra.mxu0 0.0
        %316 = vmatprep.subr.mxu0 0.0
        %317 = vmatpush1.msra.mxu0 0.0
        %318 = vmatprep.subr.mxu0 0.0
        %319 = vmatpush1.msra.mxu0 0.0
        %320 = vmatprep.subr.mxu0 0.0
        %321 = vmatpush1.msra.mxu0 0.0
        %322 = vmatprep.subr.mxu0 0.0
        %323 = vmatpush1.msra.mxu0 0.0
        %324 = vmatprep.subr.mxu0 0.0
        %325 = vmatpush1.msra.mxu0 0.0
        %326 = vmatprep.subr.mxu0 0.0
        %327 = vmatpush1.msra.mxu0 0.0
        %328 = vmatprep.subr.mxu0 0.0
        %329 = vmatpush1.msra.mxu0 0.0
        %330 = vmatprep.subr.mxu0 0.0
        %331 = vmatpush1.msra.mxu0 0.0
        %332 = vmatprep.subr.mxu0 0.0
        %333 = vmatpush1.msra.mxu0 0.0
        %334 = vmatprep.subr.mxu0 0.0
        %335 = vmatpush1.msra.mxu0 0.0
        %336 = vmatprep.subr.mxu0 0.0
        %337 = vmatpush1.msra.mxu0 0.0
        %338 = vmatprep.subr.mxu0 0.0
        %339 = vmatpush1.msra.mxu0 0.0
        %340 = vmatprep.mubr.f32.mxu0 0.0
        %341 = vmatmul.mubr.f32.gmra.mrb[0].mxu0 %v274
        %v342 = vpop.f32.mrb[0].mxu0
        %v343 = vadd.f32 0.0, %v342
        %v344 = vpop.f32.mrb[0].mxu0
        %345 = vdwg.mxu0
        %v348 = vrot.slane %v271, 7
        %vm349 = vcmask 1041409
        %v350 = vsel %vm349, %v348, %v270
        %vm351 = vcmask 31744
        %v352 = vsel %vm351, %v350, 0
        %vm354 = vcmask 1043456
        %v356 = vsel %vm354, %v262, 0
        %358 = vmatprep.subr.mxu0 0.0
        %359 = vmatpush1.msra.mxu0 %v356
        %360 = vmatprep.subr.mxu0 0.0
        %361 = vmatpush1.msra.mxu0 0.0
        %362 = vmatprep.subr.mxu0 0.0
        %363 = vmatpush1.msra.mxu0 0.0
        %364 = vmatprep.subr.mxu0 0.0
        %365 = vmatpush1.msra.mxu0 0.0
        %366 = vmatprep.subr.mxu0 0.0
        %367 = vmatpush1.msra.mxu0 0.0
        %368 = vmatprep.subr.mxu0 0.0
        %369 = vmatpush1.msra.mxu0 0.0
        %370 = vmatprep.subr.mxu0 0.0
        %371 = vmatpush1.msra.mxu0 0.0
        %372 = vmatprep.subr.mxu0 0.0
        %373 = vmatpush1.msra.mxu0 0.0
        %374 = vmatprep.subr.mxu0 0.0
        %375 = vmatpush1.msra.mxu0 0.0
        %376 = vmatprep.subr.mxu0 0.0
        %377 = vmatpush1.msra.mxu0 0.0
        %378 = vmatprep.subr.mxu0 0.0
        %379 = vmatpush1.msra.mxu0 0.0
        %380 = vmatprep.subr.mxu0 0.0
        %381 = vmatpush1.msra.mxu0 0.0
        %382 = vmatprep.subr.mxu0 0.0
        %383 = vmatpush1.msra.mxu0 0.0
        %384 = vmatprep.subr.mxu0 0.0
        %385 = vmatpush1.msra.mxu0 0.0
        %386 = vmatprep.subr.mxu0 0.0
        %387 = vmatpush1.msra.mxu0 0.0
        %388 = vmatprep.subr.mxu0 0.0
        %389 = vmatpush1.msra.mxu0 0.0
        %390 = vmatprep.subr.mxu0 0.0
        %391 = vmatpush1.msra.mxu0 0.0
        %392 = vmatprep.subr.mxu0 0.0
        %393 = vmatpush1.msra.mxu0 0.0
        %394 = vmatprep.subr.mxu0 0.0
        %395 = vmatpush1.msra.mxu0 0.0
        %396 = vmatprep.subr.mxu0 0.0
        %397 = vmatpush1.msra.mxu0 0.0
        %398 = vmatprep.subr.mxu0 0.0
        %399 = vmatpush1.msra.mxu0 0.0
        %400 = vmatprep.subr.mxu0 0.0
        %401 = vmatpush1.msra.mxu0 0.0
        %402 = vmatprep.subr.mxu0 0.0
        %403 = vmatpush1.msra.mxu0 0.0
        %404 = vmatprep.subr.mxu0 0.0
        %405 = vmatpush1.msra.mxu0 0.0
        %406 = vmatprep.subr.mxu0 0.0
        %407 = vmatpush1.msra.mxu0 0.0
        %408 = vmatprep.subr.mxu0 0.0
        %409 = vmatpush1.msra.mxu0 0.0
        %410 = vmatprep.subr.mxu0 0.0
        %411 = vmatpush1.msra.mxu0 0.0
        %412 = vmatprep.subr.mxu0 0.0
        %413 = vmatpush1.msra.mxu0 0.0
        %414 = vmatprep.subr.mxu0 0.0
        %415 = vmatpush1.msra.mxu0 0.0
        %416 = vmatprep.subr.mxu0 0.0
        %417 = vmatpush1.msra.mxu0 0.0
        %418 = vmatprep.subr.mxu0 0.0
        %419 = vmatpush1.msra.mxu0 0.0
        %420 = vmatprep.subr.mxu0 0.0
        %421 = vmatpush1.msra.mxu0 0.0
        %422 = vmatprep.mubr.f32.mxu0 0.0
        %423 = vmatmul.mubr.f32.gmra.mrb[0].mxu0 %v352
        %v424 = vpop.f32.mrb[0].mxu0
        %v425 = vadd.f32 %v343, %v424
        %v426 = vpop.f32.mrb[0].mxu0
        %427 = vdwg.mxu0
        %v429 = vlaneseq
        %v430 = vshrl.u32 %v429, 7
        %v431 = vsub.s32 0, %v430
        %v432 = vrot.slane %v267, %v431
        %v434 = vadd.f32 %v425, %v432
        %v435 = vxor.u32 %v434, 2147483648
        %v436 = vmul.f32 %v435, 1.442695
        %v437 = vpow.pop %v436
        %v438 = vadd.f32 %v437, 1.0
        %v439 = vrcp.pop %v438
        %v440 = vmul.f32 1.0, %v439
        %v441 = vtanh.pop %v434
        %v442 = vmul.f32 %v440, %v268
        %444 = vrot.lane.b32.xlu0 %v441, 96
        %v445 = vpop.permute.xlu0 %444
        %v447 = vmul.f32 %v440, %v445
        %449 = vrot.lane.b32.xlu0 %v447, 96
        %v450 = vpop.permute.xlu0 %449
        %v452 = vadd.f32 %v442, %v450
        %v453 = vtanh.pop %v452
        %455 = vrot.lane.b32.xlu0 %v440, 32
        %v456 = vpop.permute.xlu0 %455
        %v458 = vmul.f32 %v453, %v456
        %vm459 = vcmask 254976
        %460 = vst.msk [vmem:[%s252] sm:$0x3] %vm459, %v452
        %s461 = scalar_lea.vmem %s252, 2 [#allocation5]
        %462 = vst.msk [vmem:[%s461] sm:$0x3] %vm459, %v458
        %v463 = vld [vmem:[%s230 + $0x1] sm:$0x1]
        %v464 = vld [vmem:[%s230 + $0x9] sm:$0x1]
        %v466 = vsel %vm272, %v458, 0
        %468 = vmatprep.subr.mxu0 0.0
        %469 = vmatpush1.msra.mxu0 %v263
        %470 = vmatprep.subr.mxu0 0.0
        %471 = vmatpush1.msra.mxu0 %v264
        %472 = vmatprep.subr.mxu0 0.0
        %473 = vmatpush1.msra.mxu0 %v265
        %474 = vmatprep.subr.mxu0 0.0
        %475 = vmatpush1.msra.mxu0 %v266
        %476 = vmatprep.subr.mxu0 0.0
        %477 = vmatpush1.msra.mxu0 0.0
        %478 = vmatprep.subr.mxu0 0.0
        %479 = vmatpush1.msra.mxu0 0.0
        %480 = vmatprep.subr.mxu0 0.0
        %481 = vmatpush1.msra.mxu0 0.0
        %482 = vmatprep.subr.mxu0 0.0
        %483 = vmatpush1.msra.mxu0 0.0
        %484 = vmatprep.subr.mxu0 0.0
        %485 = vmatpush1.msra.mxu0 0.0
        %486 = vmatprep.subr.mxu0 0.0
        %487 = vmatpush1.msra.mxu0 0.0
        %488 = vmatprep.subr.mxu0 0.0
        %489 = vmatpush1.msra.mxu0 0.0
        %490 = vmatprep.subr.mxu0 0.0
        %491 = vmatpush1.msra.mxu0 0.0
        %492 = vmatprep.subr.mxu0 0.0
        %493 = vmatpush1.msra.mxu0 0.0
        %494 = vmatprep.subr.mxu0 0.0
        %495 = vmatpush1.msra.mxu0 0.0
        %496 = vmatprep.subr.mxu0 0.0
        %497 = vmatpush1.msra.mxu0 0.0
        %498 = vmatprep.subr.mxu0 0.0
        %499 = vmatpush1.msra.mxu0 0.0
        %500 = vmatprep.subr.mxu0 0.0
        %501 = vmatpush1.msra.mxu0 0.0
        %502 = vmatprep.subr.mxu0 0.0
        %503 = vmatpush1.msra.mxu0 0.0
        %504 = vmatprep.subr.mxu0 0.0
        %505 = vmatpush1.msra.mxu0 0.0
        %506 = vmatprep.subr.mxu0 0.0
        %507 = vmatpush1.msra.mxu0 0.0
        %508 = vmatprep.subr.mxu0 0.0
        %509 = vmatpush1.msra.mxu0 0.0
        %510 = vmatprep.subr.mxu0 0.0
        %511 = vmatpush1.msra.mxu0 0.0
        %512 = vmatprep.subr.mxu0 0.0
        %513 = vmatpush1.msra.mxu0 0.0
        %514 = vmatprep.subr.mxu0 0.0
        %515 = vmatpush1.msra.mxu0 0.0
        %516 = vmatprep.subr.mxu0 0.0
        %517 = vmatpush1.msra.mxu0 0.0
        %518 = vmatprep.subr.mxu0 0.0
        %519 = vmatpush1.msra.mxu0 0.0
        %520 = vmatprep.subr.mxu0 0.0
        %521 = vmatpush1.msra.mxu0 0.0
        %522 = vmatprep.subr.mxu0 0.0
        %523 = vmatpush1.msra.mxu0 0.0
        %524 = vmatprep.subr.mxu0 0.0
        %525 = vmatpush1.msra.mxu0 0.0
        %526 = vmatprep.subr.mxu0 0.0
        %527 = vmatpush1.msra.mxu0 0.0
        %528 = vmatprep.subr.mxu0 0.0
        %529 = vmatpush1.msra.mxu0 0.0
        %530 = vmatprep.subr.mxu0 0.0
        %531 = vmatpush1.msra.mxu0 0.0
        %532 = vmatprep.mubr.f32.mxu0 0.0
        %533 = vmatmul.mubr.f32.gmra.mrb[0].mxu0 %v466
        %v534 = vpop.f32.mrb[0].mxu0
        %v535 = vadd.f32 0.0, %v534
        %v536 = vpop.f32.mrb[0].mxu0
        %537 = vdwg.mxu0
        %v540 = vrot.slane %v464, 7
        %v541 = vsel %vm349, %v540, %v463
        %v542 = vsel %vm351, %v541, 0
        %544 = vmatprep.subr.mxu0 0.0
        %545 = vmatpush1.msra.mxu0 %v356
        %546 = vmatprep.subr.mxu0 0.0
        %547 = vmatpush1.msra.mxu0 0.0
        %548 = vmatprep.subr.mxu0 0.0
        %549 = vmatpush1.msra.mxu0 0.0
        %550 = vmatprep.subr.mxu0 0.0
        %551 = vmatpush1.msra.mxu0 0.0
        %552 = vmatprep.subr.mxu0 0.0
        %553 = vmatpush1.msra.mxu0 0.0
        %554 = vmatprep.subr.mxu0 0.0
        %555 = vmatpush1.msra.mxu0 0.0
        %556 = vmatprep.subr.mxu0 0.0
        %557 = vmatpush1.msra.mxu0 0.0
        %558 = vmatprep.subr.mxu0 0.0
        %559 = vmatpush1.msra.mxu0 0.0
        %560 = vmatprep.subr.mxu0 0.0
        %561 = vmatpush1.msra.mxu0 0.0
        %562 = vmatprep.subr.mxu0 0.0
        %563 = vmatpush1.msra.mxu0 0.0
        %564 = vmatprep.subr.mxu0 0.0
        %565 = vmatpush1.msra.mxu0 0.0
        %566 = vmatprep.subr.mxu0 0.0
        %567 = vmatpush1.msra.mxu0 0.0
        %568 = vmatprep.subr.mxu0 0.0
        %569 = vmatpush1.msra.mxu0 0.0
        %570 = vmatprep.subr.mxu0 0.0
        %571 = vmatpush1.msra.mxu0 0.0
        %572 = vmatprep.subr.mxu0 0.0
        %573 = vmatpush1.msra.mxu0 0.0
        %574 = vmatprep.subr.mxu0 0.0
        %575 = vmatpush1.msra.mxu0 0.0
        %576 = vmatprep.subr.mxu0 0.0
        %577 = vmatpush1.msra.mxu0 0.0
        %578 = vmatprep.subr.mxu0 0.0
        %579 = vmatpush1.msra.mxu0 0.0
        %580 = vmatprep.subr.mxu0 0.0
        %581 = vmatpush1.msra.mxu0 0.0
        %582 = vmatprep.subr.mxu0 0.0
        %583 = vmatpush1.msra.mxu0 0.0
        %584 = vmatprep.subr.mxu0 0.0
        %585 = vmatpush1.msra.mxu0 0.0
        %586 = vmatprep.subr.mxu0 0.0
        %587 = vmatpush1.msra.mxu0 0.0
        %588 = vmatprep.subr.mxu0 0.0
        %589 = vmatpush1.msra.mxu0 0.0
        %590 = vmatprep.subr.mxu0 0.0
        %591 = vmatpush1.msra.mxu0 0.0
        %592 = vmatprep.subr.mxu0 0.0
        %593 = vmatpush1.msra.mxu0 0.0
        %594 = vmatprep.subr.mxu0 0.0
        %595 = vmatpush1.msra.mxu0 0.0
        %596 = vmatprep.subr.mxu0 0.0
        %597 = vmatpush1.msra.mxu0 0.0
        %598 = vmatprep.subr.mxu0 0.0
        %599 = vmatpush1.msra.mxu0 0.0
        %600 = vmatprep.subr.mxu0 0.0
        %601 = vmatpush1.msra.mxu0 0.0
        %602 = vmatprep.subr.mxu0 0.0
        %603 = vmatpush1.msra.mxu0 0.0
        %604 = vmatprep.subr.mxu0 0.0
        %605 = vmatpush1.msra.mxu0 0.0
        %606 = vmatprep.subr.mxu0 0.0
        %607 = vmatpush1.msra.mxu0 0.0
        %608 = vmatprep.mubr.f32.mxu0 0.0
        %609 = vmatmul.mubr.f32.gmra.mrb[0].mxu0 %v542
        %v610 = vpop.f32.mrb[0].mxu0
        %v611 = vadd.f32 %v535, %v610
        %v612 = vpop.f32.mrb[0].mxu0
        %613 = vdwg.mxu0
        %v614 = vadd.f32 %v611, %v432
        %v615 = vxor.u32 %v614, 2147483648
        %v616 = vmul.f32 %v615, 1.442695
        %v617 = vpow.pop %v616
        %v618 = vadd.f32 %v617, 1.0
        %v619 = vrcp.pop %v618
        %v620 = vmul.f32 1.0, %v619
        %v621 = vtanh.pop %v614
        %v622 = vmul.f32 %v620, %v452
        %624 = vrot.lane.b32.xlu0 %v621, 96
        %v625 = vpop.permute.xlu0 %624
        %v627 = vmul.f32 %v620, %v625
        %629 = vrot.lane.b32.xlu0 %v627, 96
        %v630 = vpop.permute.xlu0 %629
        %v632 = vadd.f32 %v622, %v630
        %v633 = vtanh.pop %v632
        %635 = vrot.lane.b32.xlu0 %v620, 32
        %v636 = vpop.permute.xlu0 %635
        %v638 = vmul.f32 %v633, %v636
        %s639 = scalar_lea.vmem %s252, 4 [#allocation5]
        %640 = vst.msk [vmem:[%s639] sm:$0x3] %vm459, %v632
        %s641 = scalar_lea.vmem %s252, 6 [#allocation5]
        %642 = vst.msk [vmem:[%s641] sm:$0x3] %vm459, %v638
        %v643 = vld [vmem:[%s230 + $0x2] sm:$0x1]
        %v644 = vld [vmem:[%s230 + $0xa] sm:$0x1]
        %v646 = vsel %vm272, %v638, 0
        %648 = vmatprep.subr.mxu0 0.0
        %649 = vmatpush1.msra.mxu0 %v263
        %650 = vmatprep.subr.mxu0 0.0
        %651 = vmatpush1.msra.mxu0 %v264
        %652 = vmatprep.subr.mxu0 0.0
        %653 = vmatpush1.msra.mxu0 %v265
        %654 = vmatprep.subr.mxu0 0.0
        %655 = vmatpush1.msra.mxu0 %v266
        %656 = vmatprep.subr.mxu0 0.0
        %657 = vmatpush1.msra.mxu0 0.0
        %658 = vmatprep.subr.mxu0 0.0
        %659 = vmatpush1.msra.mxu0 0.0
        %660 = vmatprep.subr.mxu0 0.0
        %661 = vmatpush1.msra.mxu0 0.0
        %662 = vmatprep.subr.mxu0 0.0
        %663 = vmatpush1.msra.mxu0 0.0
        %664 = vmatprep.subr.mxu0 0.0
        %665 = vmatpush1.msra.mxu0 0.0
        %666 = vmatprep.subr.mxu0 0.0
        %667 = vmatpush1.msra.mxu0 0.0
        %668 = vmatprep.subr.mxu0 0.0
        %669 = vmatpush1.msra.mxu0 0.0
        %670 = vmatprep.subr.mxu0 0.0
        %671 = vmatpush1.msra.mxu0 0.0
        %672 = vmatprep.subr.mxu0 0.0
        %673 = vmatpush1.msra.mxu0 0.0
        %674 = vmatprep.subr.mxu0 0.0
        %675 = vmatpush1.msra.mxu0 0.0
        %676 = vmatprep.subr.mxu0 0.0
        %677 = vmatpush1.msra.mxu0 0.0
        %678 = vmatprep.subr.mxu0 0.0
        %679 = vmatpush1.msra.mxu0 0.0
        %680 = vmatprep.subr.mxu0 0.0
        %681 = vmatpush1.msra.mxu0 0.0
        %682 = vmatprep.subr.mxu0 0.0
        %683 = vmatpush1.msra.mxu0 0.0
        %684 = vmatprep.subr.mxu0 0.0
        %685 = vmatpush1.msra.mxu0 0.0
        %686 = vmatprep.subr.mxu0 0.0
        %687 = vmatpush1.msra.mxu0 0.0
        %688 = vmatprep.subr.mxu0 0.0
        %689 = vmatpush1.msra.mxu0 0.0
        %690 = vmatprep.subr.mxu0 0.0
        %691 = vmatpush1.msra.mxu0 0.0
        %692 = vmatprep.subr.mxu0 0.0
        %693 = vmatpush1.msra.mxu0 0.0
        %694 = vmatprep.subr.mxu0 0.0
        %695 = vmatpush1.msra.mxu0 0.0
        %696 = vmatprep.subr.mxu0 0.0
        %697 = vmatpush1.msra.mxu0 0.0
        %698 = vmatprep.subr.mxu0 0.0
        %699 = vmatpush1.msra.mxu0 0.0
        %700 = vmatprep.subr.mxu0 0.0
        %701 = vmatpush1.msra.mxu0 0.0
        %702 = vmatprep.subr.mxu0 0.0
        %703 = vmatpush1.msra.mxu0 0.0
        %704 = vmatprep.subr.mxu0 0.0
        %705 = vmatpush1.msra.mxu0 0.0
        %706 = vmatprep.subr.mxu0 0.0
        %707 = vmatpush1.msra.mxu0 0.0
        %708 = vmatprep.subr.mxu0 0.0
        %709 = vmatpush1.msra.mxu0 0.0
        %710 = vmatprep.subr.mxu0 0.0
        %711 = vmatpush1.msra.mxu0 0.0
        %712 = vmatprep.mubr.f32.mxu0 0.0
        %713 = vmatmul.mubr.f32.gmra.mrb[0].mxu0 %v646
        %v714 = vpop.f32.mrb[0].mxu0
        %v715 = vadd.f32 0.0, %v714
        %v716 = vpop.f32.mrb[0].mxu0
        %717 = vdwg.mxu0
        %v720 = vrot.slane %v644, 7
        %v721 = vsel %vm349, %v720, %v643
        %v722 = vsel %vm351, %v721, 0
        %724 = vmatprep.subr.mxu0 0.0
        %725 = vmatpush1.msra.mxu0 %v356
        %726 = vmatprep.subr.mxu0 0.0
        %727 = vmatpush1.msra.mxu0 0.0
        %728 = vmatprep.subr.mxu0 0.0
        %729 = vmatpush1.msra.mxu0 0.0
        %730 = vmatprep.subr.mxu0 0.0
        %731 = vmatpush1.msra.mxu0 0.0
        %732 = vmatprep.subr.mxu0 0.0
        %733 = vmatpush1.msra.mxu0 0.0
        %734 = vmatprep.subr.mxu0 0.0
        %735 = vmatpush1.msra.mxu0 0.0
        %736 = vmatprep.subr.mxu0 0.0
        %737 = vmatpush1.msra.mxu0 0.0
        %738 = vmatprep.subr.mxu0 0.0
        %739 = vmatpush1.msra.mxu0 0.0
        %740 = vmatprep.subr.mxu0 0.0
        %741 = vmatpush1.msra.mxu0 0.0
        %742 = vmatprep.subr.mxu0 0.0
        %743 = vmatpush1.msra.mxu0 0.0
        %744 = vmatprep.subr.mxu0 0.0
        %745 = vmatpush1.msra.mxu0 0.0
        %746 = vmatprep.subr.mxu0 0.0
        %747 = vmatpush1.msra.mxu0 0.0
        %748 = vmatprep.subr.mxu0 0.0
        %749 = vmatpush1.msra.mxu0 0.0
        %750 = vmatprep.subr.mxu0 0.0
        %751 = vmatpush1.msra.mxu0 0.0
        %752 = vmatprep.subr.mxu0 0.0
        %753 = vmatpush1.msra.mxu0 0.0
        %754 = vmatprep.subr.mxu0 0.0
        %755 = vmatpush1.msra.mxu0 0.0
        %756 = vmatprep.subr.mxu0 0.0
        %757 = vmatpush1.msra.mxu0 0.0
        %758 = vmatprep.subr.mxu0 0.0
        %759 = vmatpush1.msra.mxu0 0.0
        %760 = vmatprep.subr.mxu0 0.0
        %761 = vmatpush1.msra.mxu0 0.0
        %762 = vmatprep.subr.mxu0 0.0
        %763 = vmatpush1.msra.mxu0 0.0
        %764 = vmatprep.subr.mxu0 0.0
        %765 = vmatpush1.msra.mxu0 0.0
        %766 = vmatprep.subr.mxu0 0.0
        %767 = vmatpush1.msra.mxu0 0.0
        %768 = vmatprep.subr.mxu0 0.0
        %769 = vmatpush1.msra.mxu0 0.0
        %770 = vmatprep.subr.mxu0 0.0
        %771 = vmatpush1.msra.mxu0 0.0
        %772 = vmatprep.subr.mxu0 0.0
        %773 = vmatpush1.msra.mxu0 0.0
        %774 = vmatprep.subr.mxu0 0.0
        %775 = vmatpush1.msra.mxu0 0.0
        %776 = vmatprep.subr.mxu0 0.0
        %777 = vmatpush1.msra.mxu0 0.0
        %778 = vmatprep.subr.mxu0 0.0
        %779 = vmatpush1.msra.mxu0 0.0
        %780 = vmatprep.subr.mxu0 0.0
        %781 = vmatpush1.msra.mxu0 0.0
        %782 = vmatprep.subr.mxu0 0.0
        %783 = vmatpush1.msra.mxu0 0.0
        %784 = vmatprep.subr.mxu0 0.0
        %785 = vmatpush1.msra.mxu0 0.0
        %786 = vmatprep.subr.mxu0 0.0
        %787 = vmatpush1.msra.mxu0 0.0
        %788 = vmatprep.mubr.f32.mxu0 0.0
        %789 = vmatmul.mubr.f32.gmra.mrb[0].mxu0 %v722
        %v790 = vpop.f32.mrb[0].mxu0
        %v791 = vadd.f32 %v715, %v790
        %v792 = vpop.f32.mrb[0].mxu0
        %793 = vdwg.mxu0
        %v794 = vadd.f32 %v791, %v432
        %v795 = vxor.u32 %v794, 2147483648
        %v796 = vmul.f32 %v795, 1.442695
        %v797 = vpow.pop %v796
        %v798 = vadd.f32 %v797, 1.0
        %v799 = vrcp.pop %v798
        %v800 = vmul.f32 1.0, %v799
        %v801 = vtanh.pop %v794
        %v802 = vmul.f32 %v800, %v632
        %804 = vrot.lane.b32.xlu0 %v801, 96
        %v805 = vpop.permute.xlu0 %804
        %v807 = vmul.f32 %v800, %v805
        %809 = vrot.lane.b32.xlu0 %v807, 96
        %v810 = vpop.permute.xlu0 %809
        %v812 = vadd.f32 %v802, %v810
        %v813 = vtanh.pop %v812
        %815 = vrot.lane.b32.xlu0 %v800, 32
        %v816 = vpop.permute.xlu0 %815
        %v818 = vmul.f32 %v813, %v816
        %s819 = scalar_lea.vmem %s252, 8 [#allocation5]
        %820 = vst.msk [vmem:[%s819] sm:$0x3] %vm459, %v812
        %s821 = scalar_lea.vmem %s252, 10 [#allocation5]
        %822 = vst.msk [vmem:[%s821] sm:$0x3] %vm459, %v818
        %v823 = vld [vmem:[%s230 + $0x3] sm:$0x1]
        %v824 = vld [vmem:[%s230 + $0xb] sm:$0x1]
        %v826 = vsel %vm272, %v818, 0
        %828 = vmatprep.subr.mxu0 0.0
        %829 = vmatpush1.msra.mxu0 %v263
        %830 = vmatprep.subr.mxu0 0.0
        %831 = vmatpush1.msra.mxu0 %v264
        %832 = vmatprep.subr.mxu0 0.0
        %833 = vmatpush1.msra.mxu0 %v265
        %834 = vmatprep.subr.mxu0 0.0
        %835 = vmatpush1.msra.mxu0 %v266
        %836 = vmatprep.subr.mxu0 0.0
        %837 = vmatpush1.msra.mxu0 0.0
        %838 = vmatprep.subr.mxu0 0.0
        %839 = vmatpush1.msra.mxu0 0.0
        %840 = vmatprep.subr.mxu0 0.0
        %841 = vmatpush1.msra.mxu0 0.0
        %842 = vmatprep.subr.mxu0 0.0
        %843 = vmatpush1.msra.mxu0 0.0
        %844 = vmatprep.subr.mxu0 0.0
        %845 = vmatpush1.msra.mxu0 0.0
        %846 = vmatprep.subr.mxu0 0.0
        %847 = vmatpush1.msra.mxu0 0.0
        %848 = vmatprep.subr.mxu0 0.0
        %849 = vmatpush1.msra.mxu0 0.0
        %850 = vmatprep.subr.mxu0 0.0
        %851 = vmatpush1.msra.mxu0 0.0
        %852 = vmatprep.subr.mxu0 0.0
        %853 = vmatpush1.msra.mxu0 0.0
        %854 = vmatprep.subr.mxu0 0.0
        %855 = vmatpush1.msra.mxu0 0.0
        %856 = vmatprep.subr.mxu0 0.0
        %857 = vmatpush1.msra.mxu0 0.0
        %858 = vmatprep.subr.mxu0 0.0
        %859 = vmatpush1.msra.mxu0 0.0
        %860 = vmatprep.subr.mxu0 0.0
        %861 = vmatpush1.msra.mxu0 0.0
        %862 = vmatprep.subr.mxu0 0.0
        %863 = vmatpush1.msra.mxu0 0.0
        %864 = vmatprep.subr.mxu0 0.0
        %865 = vmatpush1.msra.mxu0 0.0
        %866 = vmatprep.subr.mxu0 0.0
        %867 = vmatpush1.msra.mxu0 0.0
        %868 = vmatprep.subr.mxu0 0.0
        %869 = vmatpush1.msra.mxu0 0.0
        %870 = vmatprep.subr.mxu0 0.0
        %871 = vmatpush1.msra.mxu0 0.0
        %872 = vmatprep.subr.mxu0 0.0
        %873 = vmatpush1.msra.mxu0 0.0
        %874 = vmatprep.subr.mxu0 0.0
        %875 = vmatpush1.msra.mxu0 0.0
        %876 = vmatprep.subr.mxu0 0.0
        %877 = vmatpush1.msra.mxu0 0.0
        %878 = vmatprep.subr.mxu0 0.0
        %879 = vmatpush1.msra.mxu0 0.0
        %880 = vmatprep.subr.mxu0 0.0
        %881 = vmatpush1.msra.mxu0 0.0
        %882 = vmatprep.subr.mxu0 0.0
        %883 = vmatpush1.msra.mxu0 0.0
        %884 = vmatprep.subr.mxu0 0.0
        %885 = vmatpush1.msra.mxu0 0.0
        %886 = vmatprep.subr.mxu0 0.0
        %887 = vmatpush1.msra.mxu0 0.0
        %888 = vmatprep.subr.mxu0 0.0
        %889 = vmatpush1.msra.mxu0 0.0
        %890 = vmatprep.subr.mxu0 0.0
        %891 = vmatpush1.msra.mxu0 0.0
        %892 = vmatprep.mubr.f32.mxu0 0.0
        %893 = vmatmul.mubr.f32.gmra.mrb[0].mxu0 %v826
        %v894 = vpop.f32.mrb[0].mxu0
        %v895 = vadd.f32 0.0, %v894
        %v896 = vpop.f32.mrb[0].mxu0
        %897 = vdwg.mxu0
        %v900 = vrot.slane %v824, 7
        %v901 = vsel %vm349, %v900, %v823
        %v902 = vsel %vm351, %v901, 0
        %904 = vmatprep.subr.mxu0 0.0
        %905 = vmatpush1.msra.mxu0 %v356
        %906 = vmatprep.subr.mxu0 0.0
        %907 = vmatpush1.msra.mxu0 0.0
        %908 = vmatprep.subr.mxu0 0.0
        %909 = vmatpush1.msra.mxu0 0.0
        %910 = vmatprep.subr.mxu0 0.0
        %911 = vmatpush1.msra.mxu0 0.0
        %912 = vmatprep.subr.mxu0 0.0
        %913 = vmatpush1.msra.mxu0 0.0
        %914 = vmatprep.subr.mxu0 0.0
        %915 = vmatpush1.msra.mxu0 0.0
        %916 = vmatprep.subr.mxu0 0.0
        %917 = vmatpush1.msra.mxu0 0.0
        %918 = vmatprep.subr.mxu0 0.0
        %919 = vmatpush1.msra.mxu0 0.0
        %920 = vmatprep.subr.mxu0 0.0
        %921 = vmatpush1.msra.mxu0 0.0
        %922 = vmatprep.subr.mxu0 0.0
        %923 = vmatpush1.msra.mxu0 0.0
        %924 = vmatprep.subr.mxu0 0.0
        %925 = vmatpush1.msra.mxu0 0.0
        %926 = vmatprep.subr.mxu0 0.0
        %927 = vmatpush1.msra.mxu0 0.0
        %928 = vmatprep.subr.mxu0 0.0
        %929 = vmatpush1.msra.mxu0 0.0
        %930 = vmatprep.subr.mxu0 0.0
        %931 = vmatpush1.msra.mxu0 0.0
        %932 = vmatprep.subr.mxu0 0.0
        %933 = vmatpush1.msra.mxu0 0.0
        %934 = vmatprep.subr.mxu0 0.0
        %935 = vmatpush1.msra.mxu0 0.0
        %936 = vmatprep.subr.mxu0 0.0
        %937 = vmatpush1.msra.mxu0 0.0
        %938 = vmatprep.subr.mxu0 0.0
        %939 = vmatpush1.msra.mxu0 0.0
        %940 = vmatprep.subr.mxu0 0.0
        %941 = vmatpush1.msra.mxu0 0.0
        %942 = vmatprep.subr.mxu0 0.0
        %943 = vmatpush1.msra.mxu0 0.0
        %944 = vmatprep.subr.mxu0 0.0
        %945 = vmatpush1.msra.mxu0 0.0
        %946 = vmatprep.subr.mxu0 0.0
        %947 = vmatpush1.msra.mxu0 0.0
        %948 = vmatprep.subr.mxu0 0.0
        %949 = vmatpush1.msra.mxu0 0.0
        %950 = vmatprep.subr.mxu0 0.0
        %951 = vmatpush1.msra.mxu0 0.0
        %952 = vmatprep.subr.mxu0 0.0
        %953 = vmatpush1.msra.mxu0 0.0
        %954 = vmatprep.subr.mxu0 0.0
        %955 = vmatpush1.msra.mxu0 0.0
        %956 = vmatprep.subr.mxu0 0.0
        %957 = vmatpush1.msra.mxu0 0.0
        %958 = vmatprep.subr.mxu0 0.0
        %959 = vmatpush1.msra.mxu0 0.0
        %960 = vmatprep.subr.mxu0 0.0
        %961 = vmatpush1.msra.mxu0 0.0
        %962 = vmatprep.subr.mxu0 0.0
        %963 = vmatpush1.msra.mxu0 0.0
        %964 = vmatprep.subr.mxu0 0.0
        %965 = vmatpush1.msra.mxu0 0.0
        %966 = vmatprep.subr.mxu0 0.0
        %967 = vmatpush1.msra.mxu0 0.0
        %968 = vmatprep.mubr.f32.mxu0 0.0
        %969 = vmatmul.mubr.f32.gmra.mrb[0].mxu0 %v902
        %v970 = vpop.f32.mrb[0].mxu0
        %v971 = vadd.f32 %v895, %v970
        %v972 = vpop.f32.mrb[0].mxu0
        %973 = vdwg.mxu0
        %v974 = vadd.f32 %v971, %v432
        %v975 = vxor.u32 %v974, 2147483648
        %v976 = vmul.f32 %v975, 1.442695
        %v977 = vpow.pop %v976
        %v978 = vadd.f32 %v977, 1.0
        %v979 = vrcp.pop %v978
        %v980 = vmul.f32 1.0, %v979
        %v981 = vtanh.pop %v974
        %v982 = vmul.f32 %v980, %v812
        %984 = vrot.lane.b32.xlu0 %v981, 96
        %v985 = vpop.permute.xlu0 %984
        %v987 = vmul.f32 %v980, %v985
        %989 = vrot.lane.b32.xlu0 %v987, 96
        %v990 = vpop.permute.xlu0 %989
        %v992 = vadd.f32 %v982, %v990
        %v993 = vtanh.pop %v992
        %995 = vrot.lane.b32.xlu0 %v980, 32
        %v996 = vpop.permute.xlu0 %995
        %v998 = vmul.f32 %v993, %v996
        %s999 = scalar_lea.vmem %s252, 12 [#allocation5]
        %1000 = vst.msk [vmem:[%s999] sm:$0x3] %vm459, %v992
        %s1001 = scalar_lea.vmem %s252, 14 [#allocation5]
        %1002 = vst.msk [vmem:[%s1001] sm:$0x3] %vm459, %v998
        %v1003 = vld [vmem:[%s230 + $0x4] sm:$0x1]
        %v1004 = vld [vmem:[%s230 + $0xc] sm:$0x1]
        %v1006 = vsel %vm272, %v998, 0
        %1008 = vmatprep.subr.mxu0 0.0
        %1009 = vmatpush1.msra.mxu0 %v263
        %1010 = vmatprep.subr.mxu0 0.0
        %1011 = vmatpush1.msra.mxu0 %v264
        %1012 = vmatprep.subr.mxu0 0.0
        %1013 = vmatpush1.msra.mxu0 %v265
        %1014 = vmatprep.subr.mxu0 0.0
        %1015 = vmatpush1.msra.mxu0 %v266
        %1016 = vmatprep.subr.mxu0 0.0
        %1017 = vmatpush1.msra.mxu0 0.0
        %1018 = vmatprep.subr.mxu0 0.0
        %1019 = vmatpush1.msra.mxu0 0.0
        %1020 = vmatprep.subr.mxu0 0.0
        %1021 = vmatpush1.msra.mxu0 0.0
        %1022 = vmatprep.subr.mxu0 0.0
        %1023 = vmatpush1.msra.mxu0 0.0
        %1024 = vmatprep.subr.mxu0 0.0
        %1025 = vmatpush1.msra.mxu0 0.0
        %1026 = vmatprep.subr.mxu0 0.0
        %1027 = vmatpush1.msra.mxu0 0.0
        %1028 = vmatprep.subr.mxu0 0.0
        %1029 = vmatpush1.msra.mxu0 0.0
        %1030 = vmatprep.subr.mxu0 0.0
        %1031 = vmatpush1.msra.mxu0 0.0
        %1032 = vmatprep.subr.mxu0 0.0
        %1033 = vmatpush1.msra.mxu0 0.0
        %1034 = vmatprep.subr.mxu0 0.0
        %1035 = vmatpush1.msra.mxu0 0.0
        %1036 = vmatprep.subr.mxu0 0.0
        %1037 = vmatpush1.msra.mxu0 0.0
        %1038 = vmatprep.subr.mxu0 0.0
        %1039 = vmatpush1.msra.mxu0 0.0
        %1040 = vmatprep.subr.mxu0 0.0
        %1041 = vmatpush1.msra.mxu0 0.0
        %1042 = vmatprep.subr.mxu0 0.0
        %1043 = vmatpush1.msra.mxu0 0.0
        %1044 = vmatprep.subr.mxu0 0.0
        %1045 = vmatpush1.msra.mxu0 0.0
        %1046 = vmatprep.subr.mxu0 0.0
        %1047 = vmatpush1.msra.mxu0 0.0
        %1048 = vmatprep.subr.mxu0 0.0
        %1049 = vmatpush1.msra.mxu0 0.0
        %1050 = vmatprep.subr.mxu0 0.0
        %1051 = vmatpush1.msra.mxu0 0.0
        %1052 = vmatprep.subr.mxu0 0.0
        %1053 = vmatpush1.msra.mxu0 0.0
        %1054 = vmatprep.subr.mxu0 0.0
        %1055 = vmatpush1.msra.mxu0 0.0
        %1056 = vmatprep.subr.mxu0 0.0
        %1057 = vmatpush1.msra.mxu0 0.0
        %1058 = vmatprep.subr.mxu0 0.0
        %1059 = vmatpush1.msra.mxu0 0.0
        %1060 = vmatprep.subr.mxu0 0.0
        %1061 = vmatpush1.msra.mxu0 0.0
        %1062 = vmatprep.subr.mxu0 0.0
        %1063 = vmatpush1.msra.mxu0 0.0
        %1064 = vmatprep.subr.mxu0 0.0
        %1065 = vmatpush1.msra.mxu0 0.0
        %1066 = vmatprep.subr.mxu0 0.0
        %1067 = vmatpush1.msra.mxu0 0.0
        %1068 = vmatprep.subr.mxu0 0.0
        %1069 = vmatpush1.msra.mxu0 0.0
        %1070 = vmatprep.subr.mxu0 0.0
        %1071 = vmatpush1.msra.mxu0 0.0
        %1072 = vmatprep.mubr.f32.mxu0 0.0
        %1073 = vmatmul.mubr.f32.gmra.mrb[0].mxu0 %v1006
        %v1074 = vpop.f32.mrb[0].mxu0
        %v1075 = vadd.f32 0.0, %v1074
        %v1076 = vpop.f32.mrb[0].mxu0
        %1077 = vdwg.mxu0
        %v1080 = vrot.slane %v1004, 7
        %v1081 = vsel %vm349, %v1080, %v1003
        %v1082 = vsel %vm351, %v1081, 0
        %1084 = vmatprep.subr.mxu0 0.0
        %1085 = vmatpush1.msra.mxu0 %v356
        %1086 = vmatprep.subr.mxu0 0.0
        %1087 = vmatpush1.msra.mxu0 0.0
        %1088 = vmatprep.subr.mxu0 0.0
        %1089 = vmatpush1.msra.mxu0 0.0
        %1090 = vmatprep.subr.mxu0 0.0
        %1091 = vmatpush1.msra.mxu0 0.0
        %1092 = vmatprep.subr.mxu0 0.0
        %1093 = vmatpush1.msra.mxu0 0.0
        %1094 = vmatprep.subr.mxu0 0.0
        %1095 = vmatpush1.msra.mxu0 0.0
        %1096 = vmatprep.subr.mxu0 0.0
        %1097 = vmatpush1.msra.mxu0 0.0
        %1098 = vmatprep.subr.mxu0 0.0
        %1099 = vmatpush1.msra.mxu0 0.0
        %1100 = vmatprep.subr.mxu0 0.0
        %1101 = vmatpush1.msra.mxu0 0.0
        %1102 = vmatprep.subr.mxu0 0.0
        %1103 = vmatpush1.msra.mxu0 0.0
        %1104 = vmatprep.subr.mxu0 0.0
        %1105 = vmatpush1.msra.mxu0 0.0
        %1106 = vmatprep.subr.mxu0 0.0
        %1107 = vmatpush1.msra.mxu0 0.0
        %1108 = vmatprep.subr.mxu0 0.0
        %1109 = vmatpush1.msra.mxu0 0.0
        %1110 = vmatprep.subr.mxu0 0.0
        %1111 = vmatpush1.msra.mxu0 0.0
        %1112 = vmatprep.subr.mxu0 0.0
        %1113 = vmatpush1.msra.mxu0 0.0
        %1114 = vmatprep.subr.mxu0 0.0
        %1115 = vmatpush1.msra.mxu0 0.0
        %1116 = vmatprep.subr.mxu0 0.0
        %1117 = vmatpush1.msra.mxu0 0.0
        %1118 = vmatprep.subr.mxu0 0.0
        %1119 = vmatpush1.msra.mxu0 0.0
        %1120 = vmatprep.subr.mxu0 0.0
        %1121 = vmatpush1.msra.mxu0 0.0
        %1122 = vmatprep.subr.mxu0 0.0
        %1123 = vmatpush1.msra.mxu0 0.0
        %1124 = vmatprep.subr.mxu0 0.0
        %1125 = vmatpush1.msra.mxu0 0.0
        %1126 = vmatprep.subr.mxu0 0.0
        %1127 = vmatpush1.msra.mxu0 0.0
        %1128 = vmatprep.subr.mxu0 0.0
        %1129 = vmatpush1.msra.mxu0 0.0
        %1130 = vmatprep.subr.mxu0 0.0
        %1131 = vmatpush1.msra.mxu0 0.0
        %1132 = vmatprep.subr.mxu0 0.0
        %1133 = vmatpush1.msra.mxu0 0.0
        %1134 = vmatprep.subr.mxu0 0.0
        %1135 = vmatpush1.msra.mxu0 0.0
        %1136 = vmatprep.subr.mxu0 0.0
        %1137 = vmatpush1.msra.mxu0 0.0
        %1138 = vmatprep.subr.mxu0 0.0
        %1139 = vmatpush1.msra.mxu0 0.0
        %1140 = vmatprep.subr.mxu0 0.0
        %1141 = vmatpush1.msra.mxu0 0.0
        %1142 = vmatprep.subr.mxu0 0.0
        %1143 = vmatpush1.msra.mxu0 0.0
        %1144 = vmatprep.subr.mxu0 0.0
        %1145 = vmatpush1.msra.mxu0 0.0
        %1146 = vmatprep.subr.mxu0 0.0
        %1147 = vmatpush1.msra.mxu0 0.0
        %1148 = vmatprep.mubr.f32.mxu0 0.0
        %1149 = vmatmul.mubr.f32.gmra.mrb[0].mxu0 %v1082
        %v1150 = vpop.f32.mrb[0].mxu0
        %v1151 = vadd.f32 %v1075, %v1150
        %v1152 = vpop.f32.mrb[0].mxu0
        %1153 = vdwg.mxu0
        %v1154 = vadd.f32 %v1151, %v432
        %v1155 = vxor.u32 %v1154, 2147483648
        %v1156 = vmul.f32 %v1155, 1.442695
        %v1157 = vpow.pop %v1156
        %v1158 = vadd.f32 %v1157, 1.0
        %v1159 = vrcp.pop %v1158
        %v1160 = vmul.f32 1.0, %v1159
        %v1161 = vtanh.pop %v1154
        %v1162 = vmul.f32 %v1160, %v992
        %1164 = vrot.lane.b32.xlu0 %v1161, 96
        %v1165 = vpop.permute.xlu0 %1164
        %v1167 = vmul.f32 %v1160, %v1165
        %1169 = vrot.lane.b32.xlu0 %v1167, 96
        %v1170 = vpop.permute.xlu0 %1169
        %v1172 = vadd.f32 %v1162, %v1170
        %v1173 = vtanh.pop %v1172
        %1175 = vrot.lane.b32.xlu0 %v1160, 32
        %v1176 = vpop.permute.xlu0 %1175
        %v1178 = vmul.f32 %v1173, %v1176
        %s1179 = scalar_lea.vmem %s252, 16 [#allocation5]
        %1180 = vst.msk [vmem:[%s1179] sm:$0x3] %vm459, %v1172
        %s1181 = scalar_lea.vmem %s252, 18 [#allocation5]
        %1182 = vst.msk [vmem:[%s1181] sm:$0x3] %vm459, %v1178
        %v1183 = vld [vmem:[%s230 + $0x5] sm:$0x1]
        %v1184 = vld [vmem:[%s230 + $0xd] sm:$0x1]
        %v1186 = vsel %vm272, %v1178, 0
        %1188 = vmatprep.subr.mxu0 0.0
        %1189 = vmatpush1.msra.mxu0 %v263
        %1190 = vmatprep.subr.mxu0 0.0
        %1191 = vmatpush1.msra.mxu0 %v264
        %1192 = vmatprep.subr.mxu0 0.0
        %1193 = vmatpush1.msra.mxu0 %v265
        %1194 = vmatprep.subr.mxu0 0.0
        %1195 = vmatpush1.msra.mxu0 %v266
        %1196 = vmatprep.subr.mxu0 0.0
        %1197 = vmatpush1.msra.mxu0 0.0
        %1198 = vmatprep.subr.mxu0 0.0
        %1199 = vmatpush1.msra.mxu0 0.0
        %1200 = vmatprep.subr.mxu0 0.0
        %1201 = vmatpush1.msra.mxu0 0.0
        %1202 = vmatprep.subr.mxu0 0.0
        %1203 = vmatpush1.msra.mxu0 0.0
        %1204 = vmatprep.subr.mxu0 0.0
        %1205 = vmatpush1.msra.mxu0 0.0
        %1206 = vmatprep.subr.mxu0 0.0
        %1207 = vmatpush1.msra.mxu0 0.0
        %1208 = vmatprep.subr.mxu0 0.0
        %1209 = vmatpush1.msra.mxu0 0.0
        %1210 = vmatprep.subr.mxu0 0.0
        %1211 = vmatpush1.msra.mxu0 0.0
        %1212 = vmatprep.subr.mxu0 0.0
        %1213 = vmatpush1.msra.mxu0 0.0
        %1214 = vmatprep.subr.mxu0 0.0
        %1215 = vmatpush1.msra.mxu0 0.0
        %1216 = vmatprep.subr.mxu0 0.0
        %1217 = vmatpush1.msra.mxu0 0.0
        %1218 = vmatprep.subr.mxu0 0.0
        %1219 = vmatpush1.msra.mxu0 0.0
        %1220 = vmatprep.subr.mxu0 0.0
        %1221 = vmatpush1.msra.mxu0 0.0
        %1222 = vmatprep.subr.mxu0 0.0
        %1223 = vmatpush1.msra.mxu0 0.0
        %1224 = vmatprep.subr.mxu0 0.0
        %1225 = vmatpush1.msra.mxu0 0.0
        %1226 = vmatprep.subr.mxu0 0.0
        %1227 = vmatpush1.msra.mxu0 0.0
        %1228 = vmatprep.subr.mxu0 0.0
        %1229 = vmatpush1.msra.mxu0 0.0
        %1230 = vmatprep.subr.mxu0 0.0
        %1231 = vmatpush1.msra.mxu0 0.0
        %1232 = vmatprep.subr.mxu0 0.0
        %1233 = vmatpush1.msra.mxu0 0.0
        %1234 = vmatprep.subr.mxu0 0.0
        %1235 = vmatpush1.msra.mxu0 0.0
        %1236 = vmatprep.subr.mxu0 0.0
        %1237 = vmatpush1.msra.mxu0 0.0
        %1238 = vmatprep.subr.mxu0 0.0
        %1239 = vmatpush1.msra.mxu0 0.0
        %1240 = vmatprep.subr.mxu0 0.0
        %1241 = vmatpush1.msra.mxu0 0.0
        %1242 = vmatprep.subr.mxu0 0.0
        %1243 = vmatpush1.msra.mxu0 0.0
        %1244 = vmatprep.subr.mxu0 0.0
        %1245 = vmatpush1.msra.mxu0 0.0
        %1246 = vmatprep.subr.mxu0 0.0
        %1247 = vmatpush1.msra.mxu0 0.0
        %1248 = vmatprep.subr.mxu0 0.0
        %1249 = vmatpush1.msra.mxu0 0.0
        %1250 = vmatprep.subr.mxu0 0.0
        %1251 = vmatpush1.msra.mxu0 0.0
        %1252 = vmatprep.mubr.f32.mxu0 0.0
        %1253 = vmatmul.mubr.f32.gmra.mrb[0].mxu0 %v1186
        %v1254 = vpop.f32.mrb[0].mxu0
        %v1255 = vadd.f32 0.0, %v1254
        %v1256 = vpop.f32.mrb[0].mxu0
        %1257 = vdwg.mxu0
        %v1260 = vrot.slane %v1184, 7
        %v1261 = vsel %vm349, %v1260, %v1183
        %v1262 = vsel %vm351, %v1261, 0
        %1264 = vmatprep.subr.mxu0 0.0
        %1265 = vmatpush1.msra.mxu0 %v356
        %1266 = vmatprep.subr.mxu0 0.0
        %1267 = vmatpush1.msra.mxu0 0.0
        %1268 = vmatprep.subr.mxu0 0.0
        %1269 = vmatpush1.msra.mxu0 0.0
        %1270 = vmatprep.subr.mxu0 0.0
        %1271 = vmatpush1.msra.mxu0 0.0
        %1272 = vmatprep.subr.mxu0 0.0
        %1273 = vmatpush1.msra.mxu0 0.0
        %1274 = vmatprep.subr.mxu0 0.0
        %1275 = vmatpush1.msra.mxu0 0.0
        %1276 = vmatprep.subr.mxu0 0.0
        %1277 = vmatpush1.msra.mxu0 0.0
        %1278 = vmatprep.subr.mxu0 0.0
        %1279 = vmatpush1.msra.mxu0 0.0
        %1280 = vmatprep.subr.mxu0 0.0
        %1281 = vmatpush1.msra.mxu0 0.0
        %1282 = vmatprep.subr.mxu0 0.0
        %1283 = vmatpush1.msra.mxu0 0.0
        %1284 = vmatprep.subr.mxu0 0.0
        %1285 = vmatpush1.msra.mxu0 0.0
        %1286 = vmatprep.subr.mxu0 0.0
        %1287 = vmatpush1.msra.mxu0 0.0
        %1288 = vmatprep.subr.mxu0 0.0
        %1289 = vmatpush1.msra.mxu0 0.0
        %1290 = vmatprep.subr.mxu0 0.0
        %1291 = vmatpush1.msra.mxu0 0.0
        %1292 = vmatprep.subr.mxu0 0.0
        %1293 = vmatpush1.msra.mxu0 0.0
        %1294 = vmatprep.subr.mxu0 0.0
        %1295 = vmatpush1.msra.mxu0 0.0
        %1296 = vmatprep.subr.mxu0 0.0
        %1297 = vmatpush1.msra.mxu0 0.0
        %1298 = vmatprep.subr.mxu0 0.0
        %1299 = vmatpush1.msra.mxu0 0.0
        %1300 = vmatprep.subr.mxu0 0.0
        %1301 = vmatpush1.msra.mxu0 0.0
        %1302 = vmatprep.subr.mxu0 0.0
        %1303 = vmatpush1.msra.mxu0 0.0
        %1304 = vmatprep.subr.mxu0 0.0
        %1305 = vmatpush1.msra.mxu0 0.0
        %1306 = vmatprep.subr.mxu0 0.0
        %1307 = vmatpush1.msra.mxu0 0.0
        %1308 = vmatprep.subr.mxu0 0.0
        %1309 = vmatpush1.msra.mxu0 0.0
        %1310 = vmatprep.subr.mxu0 0.0
        %1311 = vmatpush1.msra.mxu0 0.0
        %1312 = vmatprep.subr.mxu0 0.0
        %1313 = vmatpush1.msra.mxu0 0.0
        %1314 = vmatprep.subr.mxu0 0.0
        %1315 = vmatpush1.msra.mxu0 0.0
        %1316 = vmatprep.subr.mxu0 0.0
        %1317 = vmatpush1.msra.mxu0 0.0
        %1318 = vmatprep.subr.mxu0 0.0
        %1319 = vmatpush1.msra.mxu0 0.0
        %1320 = vmatprep.subr.mxu0 0.0
        %1321 = vmatpush1.msra.mxu0 0.0
        %1322 = vmatprep.subr.mxu0 0.0
        %1323 = vmatpush1.msra.mxu0 0.0
        %1324 = vmatprep.subr.mxu0 0.0
        %1325 = vmatpush1.msra.mxu0 0.0
        %1326 = vmatprep.subr.mxu0 0.0
        %1327 = vmatpush1.msra.mxu0 0.0
        %1328 = vmatprep.mubr.f32.mxu0 0.0
        %1329 = vmatmul.mubr.f32.gmra.mrb[0].mxu0 %v1262
        %v1330 = vpop.f32.mrb[0].mxu0
        %v1331 = vadd.f32 %v1255, %v1330
        %v1332 = vpop.f32.mrb[0].mxu0
        %1333 = vdwg.mxu0
        %v1334 = vadd.f32 %v1331, %v432
        %v1335 = vxor.u32 %v1334, 2147483648
        %v1336 = vmul.f32 %v1335, 1.442695
        %v1337 = vpow.pop %v1336
        %v1338 = vadd.f32 %v1337, 1.0
        %v1339 = vrcp.pop %v1338
        %v1340 = vmul.f32 1.0, %v1339
        %v1341 = vtanh.pop %v1334
        %v1342 = vmul.f32 %v1340, %v1172
        %1344 = vrot.lane.b32.xlu0 %v1341, 96
        %v1345 = vpop.permute.xlu0 %1344
        %v1347 = vmul.f32 %v1340, %v1345
        %1349 = vrot.lane.b32.xlu0 %v1347, 96
        %v1350 = vpop.permute.xlu0 %1349
        %v1352 = vadd.f32 %v1342, %v1350
        %v1353 = vtanh.pop %v1352
        %1355 = vrot.lane.b32.xlu0 %v1340, 32
        %v1356 = vpop.permute.xlu0 %1355
        %v1358 = vmul.f32 %v1353, %v1356
        %s1359 = scalar_lea.vmem %s252, 20 [#allocation5]
        %1360 = vst.msk [vmem:[%s1359] sm:$0x3] %vm459, %v1352
        %s1361 = scalar_lea.vmem %s252, 22 [#allocation5]
        %1362 = vst.msk [vmem:[%s1361] sm:$0x3] %vm459, %v1358
        %v1363 = vld [vmem:[%s230 + $0x6] sm:$0x1]
        %v1364 = vld [vmem:[%s230 + $0xe] sm:$0x1]
        %v1366 = vsel %vm272, %v1358, 0
        %1368 = vmatprep.subr.mxu0 0.0
        %1369 = vmatpush1.msra.mxu0 %v263
        %1370 = vmatprep.subr.mxu0 0.0
        %1371 = vmatpush1.msra.mxu0 %v264
        %1372 = vmatprep.subr.mxu0 0.0
        %1373 = vmatpush1.msra.mxu0 %v265
        %1374 = vmatprep.subr.mxu0 0.0
        %1375 = vmatpush1.msra.mxu0 %v266
        %1376 = vmatprep.subr.mxu0 0.0
        %1377 = vmatpush1.msra.mxu0 0.0
        %1378 = vmatprep.subr.mxu0 0.0
        %1379 = vmatpush1.msra.mxu0 0.0
        %1380 = vmatprep.subr.mxu0 0.0
        %1381 = vmatpush1.msra.mxu0 0.0
        %1382 = vmatprep.subr.mxu0 0.0
        %1383 = vmatpush1.msra.mxu0 0.0
        %1384 = vmatprep.subr.mxu0 0.0
        %1385 = vmatpush1.msra.mxu0 0.0
        %1386 = vmatprep.subr.mxu0 0.0
        %1387 = vmatpush1.msra.mxu0 0.0
        %1388 = vmatprep.subr.mxu0 0.0
        %1389 = vmatpush1.msra.mxu0 0.0
        %1390 = vmatprep.subr.mxu0 0.0
        %1391 = vmatpush1.msra.mxu0 0.0
        %1392 = vmatprep.subr.mxu0 0.0
        %1393 = vmatpush1.msra.mxu0 0.0
        %1394 = vmatprep.subr.mxu0 0.0
        %1395 = vmatpush1.msra.mxu0 0.0
        %1396 = vmatprep.subr.mxu0 0.0
        %1397 = vmatpush1.msra.mxu0 0.0
        %1398 = vmatprep.subr.mxu0 0.0
        %1399 = vmatpush1.msra.mxu0 0.0
        %1400 = vmatprep.subr.mxu0 0.0
        %1401 = vmatpush1.msra.mxu0 0.0
        %1402 = vmatprep.subr.mxu0 0.0
        %1403 = vmatpush1.msra.mxu0 0.0
        %1404 = vmatprep.subr.mxu0 0.0
        %1405 = vmatpush1.msra.mxu0 0.0
        %1406 = vmatprep.subr.mxu0 0.0
        %1407 = vmatpush1.msra.mxu0 0.0
        %1408 = vmatprep.subr.mxu0 0.0
        %1409 = vmatpush1.msra.mxu0 0.0
        %1410 = vmatprep.subr.mxu0 0.0
        %1411 = vmatpush1.msra.mxu0 0.0
        %1412 = vmatprep.subr.mxu0 0.0
        %1413 = vmatpush1.msra.mxu0 0.0
        %1414 = vmatprep.subr.mxu0 0.0
        %1415 = vmatpush1.msra.mxu0 0.0
        %1416 = vmatprep.subr.mxu0 0.0
        %1417 = vmatpush1.msra.mxu0 0.0
        %1418 = vmatprep.subr.mxu0 0.0
        %1419 = vmatpush1.msra.mxu0 0.0
        %1420 = vmatprep.subr.mxu0 0.0
        %1421 = vmatpush1.msra.mxu0 0.0
        %1422 = vmatprep.subr.mxu0 0.0
        %1423 = vmatpush1.msra.mxu0 0.0
        %1424 = vmatprep.subr.mxu0 0.0
        %1425 = vmatpush1.msra.mxu0 0.0
        %1426 = vmatprep.subr.mxu0 0.0
        %1427 = vmatpush1.msra.mxu0 0.0
        %1428 = vmatprep.subr.mxu0 0.0
        %1429 = vmatpush1.msra.mxu0 0.0
        %1430 = vmatprep.subr.mxu0 0.0
        %1431 = vmatpush1.msra.mxu0 0.0
        %1432 = vmatprep.mubr.f32.mxu0 0.0
        %1433 = vmatmul.mubr.f32.gmra.mrb[0].mxu0 %v1366
        %v1434 = vpop.f32.mrb[0].mxu0
        %v1435 = vadd.f32 0.0, %v1434
        %v1436 = vpop.f32.mrb[0].mxu0
        %1437 = vdwg.mxu0
        %v1440 = vrot.slane %v1364, 7
        %v1441 = vsel %vm349, %v1440, %v1363
        %v1442 = vsel %vm351, %v1441, 0
        %1444 = vmatprep.subr.mxu0 0.0
        %1445 = vmatpush1.msra.mxu0 %v356
        %1446 = vmatprep.subr.mxu0 0.0
        %1447 = vmatpush1.msra.mxu0 0.0
        %1448 = vmatprep.subr.mxu0 0.0
        %1449 = vmatpush1.msra.mxu0 0.0
        %1450 = vmatprep.subr.mxu0 0.0
        %1451 = vmatpush1.msra.mxu0 0.0
        %1452 = vmatprep.subr.mxu0 0.0
        %1453 = vmatpush1.msra.mxu0 0.0
        %1454 = vmatprep.subr.mxu0 0.0
        %1455 = vmatpush1.msra.mxu0 0.0
        %1456 = vmatprep.subr.mxu0 0.0
        %1457 = vmatpush1.msra.mxu0 0.0
        %1458 = vmatprep.subr.mxu0 0.0
        %1459 = vmatpush1.msra.mxu0 0.0
        %1460 = vmatprep.subr.mxu0 0.0
        %1461 = vmatpush1.msra.mxu0 0.0
        %1462 = vmatprep.subr.mxu0 0.0
        %1463 = vmatpush1.msra.mxu0 0.0
        %1464 = vmatprep.subr.mxu0 0.0
        %1465 = vmatpush1.msra.mxu0 0.0
        %1466 = vmatprep.subr.mxu0 0.0
        %1467 = vmatpush1.msra.mxu0 0.0
        %1468 = vmatprep.subr.mxu0 0.0
        %1469 = vmatpush1.msra.mxu0 0.0
        %1470 = vmatprep.subr.mxu0 0.0
        %1471 = vmatpush1.msra.mxu0 0.0
        %1472 = vmatprep.subr.mxu0 0.0
        %1473 = vmatpush1.msra.mxu0 0.0
        %1474 = vmatprep.subr.mxu0 0.0
        %1475 = vmatpush1.msra.mxu0 0.0
        %1476 = vmatprep.subr.mxu0 0.0
        %1477 = vmatpush1.msra.mxu0 0.0
        %1478 = vmatprep.subr.mxu0 0.0
        %1479 = vmatpush1.msra.mxu0 0.0
        %1480 = vmatprep.subr.mxu0 0.0
        %1481 = vmatpush1.msra.mxu0 0.0
        %1482 = vmatprep.subr.mxu0 0.0
        %1483 = vmatpush1.msra.mxu0 0.0
        %1484 = vmatprep.subr.mxu0 0.0
        %1485 = vmatpush1.msra.mxu0 0.0
        %1486 = vmatprep.subr.mxu0 0.0
        %1487 = vmatpush1.msra.mxu0 0.0
        %1488 = vmatprep.subr.mxu0 0.0
        %1489 = vmatpush1.msra.mxu0 0.0
        %1490 = vmatprep.subr.mxu0 0.0
        %1491 = vmatpush1.msra.mxu0 0.0
        %1492 = vmatprep.subr.mxu0 0.0
        %1493 = vmatpush1.msra.mxu0 0.0
        %1494 = vmatprep.subr.mxu0 0.0
        %1495 = vmatpush1.msra.mxu0 0.0
        %1496 = vmatprep.subr.mxu0 0.0
        %1497 = vmatpush1.msra.mxu0 0.0
        %1498 = vmatprep.subr.mxu0 0.0
        %1499 = vmatpush1.msra.mxu0 0.0
        %1500 = vmatprep.subr.mxu0 0.0
        %1501 = vmatpush1.msra.mxu0 0.0
        %1502 = vmatprep.subr.mxu0 0.0
        %1503 = vmatpush1.msra.mxu0 0.0
        %1504 = vmatprep.subr.mxu0 0.0
        %1505 = vmatpush1.msra.mxu0 0.0
        %1506 = vmatprep.subr.mxu0 0.0
        %1507 = vmatpush1.msra.mxu0 0.0
        %1508 = vmatprep.mubr.f32.mxu0 0.0
        %1509 = vmatmul.mubr.f32.gmra.mrb[0].mxu0 %v1442
        %v1510 = vpop.f32.mrb[0].mxu0
        %v1511 = vadd.f32 %v1435, %v1510
        %v1512 = vpop.f32.mrb[0].mxu0
        %1513 = vdwg.mxu0
        %v1514 = vadd.f32 %v1511, %v432
        %v1515 = vxor.u32 %v1514, 2147483648
        %v1516 = vmul.f32 %v1515, 1.442695
        %v1517 = vpow.pop %v1516
        %v1518 = vadd.f32 %v1517, 1.0
        %v1519 = vrcp.pop %v1518
        %v1520 = vmul.f32 1.0, %v1519
        %v1521 = vtanh.pop %v1514
        %v1522 = vmul.f32 %v1520, %v1352
        %1524 = vrot.lane.b32.xlu0 %v1521, 96
        %v1525 = vpop.permute.xlu0 %1524
        %v1527 = vmul.f32 %v1520, %v1525
        %1529 = vrot.lane.b32.xlu0 %v1527, 96
        %v1530 = vpop.permute.xlu0 %1529
        %v1532 = vadd.f32 %v1522, %v1530
        %v1533 = vtanh.pop %v1532
        %1535 = vrot.lane.b32.xlu0 %v1520, 32
        %v1536 = vpop.permute.xlu0 %1535
        %v1538 = vmul.f32 %v1533, %v1536
        %s1539 = scalar_lea.vmem %s252, 24 [#allocation5]
        %1540 = vst.msk [vmem:[%s1539] sm:$0x3] %vm459, %v1532
        %s1541 = scalar_lea.vmem %s252, 26 [#allocation5]
        %1542 = vst.msk [vmem:[%s1541] sm:$0x3] %vm459, %v1538
        %v1543 = vld [vmem:[%s230 + $0x7] sm:$0x1]
        %v1544 = vld [vmem:[%s230 + $0xf] sm:$0x1]
        %v1546 = vsel %vm272, %v1538, 0
        %1548 = vmatprep.subr.mxu0 0.0
        %1549 = vmatpush1.msra.mxu0 %v263
        %1550 = vmatprep.subr.mxu0 0.0
        %1551 = vmatpush1.msra.mxu0 %v264
        %1552 = vmatprep.subr.mxu0 0.0
        %1553 = vmatpush1.msra.mxu0 %v265
        %1554 = vmatprep.subr.mxu0 0.0
        %1555 = vmatpush1.msra.mxu0 %v266
        %1556 = vmatprep.subr.mxu0 0.0
        %1557 = vmatpush1.msra.mxu0 0.0
        %1558 = vmatprep.subr.mxu0 0.0
        %1559 = vmatpush1.msra.mxu0 0.0
        %1560 = vmatprep.subr.mxu0 0.0
        %1561 = vmatpush1.msra.mxu0 0.0
        %1562 = vmatprep.subr.mxu0 0.0
        %1563 = vmatpush1.msra.mxu0 0.0
        %1564 = vmatprep.subr.mxu0 0.0
        %1565 = vmatpush1.msra.mxu0 0.0
        %1566 = vmatprep.subr.mxu0 0.0
        %1567 = vmatpush1.msra.mxu0 0.0
        %1568 = vmatprep.subr.mxu0 0.0
        %1569 = vmatpush1.msra.mxu0 0.0
        %1570 = vmatprep.subr.mxu0 0.0
        %1571 = vmatpush1.msra.mxu0 0.0
        %1572 = vmatprep.subr.mxu0 0.0
        %1573 = vmatpush1.msra.mxu0 0.0
        %1574 = vmatprep.subr.mxu0 0.0
        %1575 = vmatpush1.msra.mxu0 0.0
        %1576 = vmatprep.subr.mxu0 0.0
        %1577 = vmatpush1.msra.mxu0 0.0
        %1578 = vmatprep.subr.mxu0 0.0
        %1579 = vmatpush1.msra.mxu0 0.0
        %1580 = vmatprep.subr.mxu0 0.0
        %1581 = vmatpush1.msra.mxu0 0.0
        %1582 = vmatprep.subr.mxu0 0.0
        %1583 = vmatpush1.msra.mxu0 0.0
        %1584 = vmatprep.subr.mxu0 0.0
        %1585 = vmatpush1.msra.mxu0 0.0
        %1586 = vmatprep.subr.mxu0 0.0
        %1587 = vmatpush1.msra.mxu0 0.0
        %1588 = vmatprep.subr.mxu0 0.0
        %1589 = vmatpush1.msra.mxu0 0.0
        %1590 = vmatprep.subr.mxu0 0.0
        %1591 = vmatpush1.msra.mxu0 0.0
        %1592 = vmatprep.subr.mxu0 0.0
        %1593 = vmatpush1.msra.mxu0 0.0
        %1594 = vmatprep.subr.mxu0 0.0
        %1595 = vmatpush1.msra.mxu0 0.0
        %1596 = vmatprep.subr.mxu0 0.0
        %1597 = vmatpush1.msra.mxu0 0.0
        %1598 = vmatprep.subr.mxu0 0.0
        %1599 = vmatpush1.msra.mxu0 0.0
        %1600 = vmatprep.subr.mxu0 0.0
        %1601 = vmatpush1.msra.mxu0 0.0
        %1602 = vmatprep.subr.mxu0 0.0
        %1603 = vmatpush1.msra.mxu0 0.0
        %1604 = vmatprep.subr.mxu0 0.0
        %1605 = vmatpush1.msra.mxu0 0.0
        %1606 = vmatprep.subr.mxu0 0.0
        %1607 = vmatpush1.msra.mxu0 0.0
        %1608 = vmatprep.subr.mxu0 0.0
        %1609 = vmatpush1.msra.mxu0 0.0
        %1610 = vmatprep.subr.mxu0 0.0
        %1611 = vmatpush1.msra.mxu0 0.0
        %1612 = vmatprep.mubr.f32.mxu0 0.0
        %1613 = vmatmul.mubr.f32.gmra.mrb[0].mxu0 %v1546
        %v1614 = vpop.f32.mrb[0].mxu0
        %v1615 = vadd.f32 0.0, %v1614
        %v1616 = vpop.f32.mrb[0].mxu0
        %1617 = vdwg.mxu0
        %v1620 = vrot.slane %v1544, 7
        %v1621 = vsel %vm349, %v1620, %v1543
        %v1622 = vsel %vm351, %v1621, 0
        %1624 = vmatprep.subr.mxu0 0.0
        %1625 = vmatpush1.msra.mxu0 %v356
        %1626 = vmatprep.subr.mxu0 0.0
        %1627 = vmatpush1.msra.mxu0 0.0
        %1628 = vmatprep.subr.mxu0 0.0
        %1629 = vmatpush1.msra.mxu0 0.0
        %1630 = vmatprep.subr.mxu0 0.0
        %1631 = vmatpush1.msra.mxu0 0.0
        %1632 = vmatprep.subr.mxu0 0.0
        %1633 = vmatpush1.msra.mxu0 0.0
        %1634 = vmatprep.subr.mxu0 0.0
        %1635 = vmatpush1.msra.mxu0 0.0
        %1636 = vmatprep.subr.mxu0 0.0
        %1637 = vmatpush1.msra.mxu0 0.0
        %1638 = vmatprep.subr.mxu0 0.0
        %1639 = vmatpush1.msra.mxu0 0.0
        %1640 = vmatprep.subr.mxu0 0.0
        %1641 = vmatpush1.msra.mxu0 0.0
        %1642 = vmatprep.subr.mxu0 0.0
        %1643 = vmatpush1.msra.mxu0 0.0
        %1644 = vmatprep.subr.mxu0 0.0
        %1645 = vmatpush1.msra.mxu0 0.0
        %1646 = vmatprep.subr.mxu0 0.0
        %1647 = vmatpush1.msra.mxu0 0.0
        %1648 = vmatprep.subr.mxu0 0.0
        %1649 = vmatpush1.msra.mxu0 0.0
        %1650 = vmatprep.subr.mxu0 0.0
        %1651 = vmatpush1.msra.mxu0 0.0
        %1652 = vmatprep.subr.mxu0 0.0
        %1653 = vmatpush1.msra.mxu0 0.0
        %1654 = vmatprep.subr.mxu0 0.0
        %1655 = vmatpush1.msra.mxu0 0.0
        %1656 = vmatprep.subr.mxu0 0.0
        %1657 = vmatpush1.msra.mxu0 0.0
        %1658 = vmatprep.subr.mxu0 0.0
        %1659 = vmatpush1.msra.mxu0 0.0
        %1660 = vmatprep.subr.mxu0 0.0
        %1661 = vmatpush1.msra.mxu0 0.0
        %1662 = vmatprep.subr.mxu0 0.0
        %1663 = vmatpush1.msra.mxu0 0.0
        %1664 = vmatprep.subr.mxu0 0.0
        %1665 = vmatpush1.msra.mxu0 0.0
        %1666 = vmatprep.subr.mxu0 0.0
        %1667 = vmatpush1.msra.mxu0 0.0
        %1668 = vmatprep.subr.mxu0 0.0
        %1669 = vmatpush1.msra.mxu0 0.0
        %1670 = vmatprep.subr.mxu0 0.0
        %1671 = vmatpush1.msra.mxu0 0.0
        %1672 = vmatprep.subr.mxu0 0.0
        %1673 = vmatpush1.msra.mxu0 0.0
        %1674 = vmatprep.subr.mxu0 0.0
        %1675 = vmatpush1.msra.mxu0 0.0
        %1676 = vmatprep.subr.mxu0 0.0
        %1677 = vmatpush1.msra.mxu0 0.0
        %1678 = vmatprep.subr.mxu0 0.0
        %1679 = vmatpush1.msra.mxu0 0.0
        %1680 = vmatprep.subr.mxu0 0.0
        %1681 = vmatpush1.msra.mxu0 0.0
        %1682 = vmatprep.subr.mxu0 0.0
        %1683 = vmatpush1.msra.mxu0 0.0
        %1684 = vmatprep.subr.mxu0 0.0
        %1685 = vmatpush1.msra.mxu0 0.0
        %1686 = vmatprep.subr.mxu0 0.0
        %1687 = vmatpush1.msra.mxu0 0.0
        %1688 = vmatprep.mubr.f32.mxu0 0.0
        %1689 = vmatmul.mubr.f32.gmra.mrb[0].mxu0 %v1622
        %v1690 = vpop.f32.mrb[0].mxu0
        %v1691 = vadd.f32 %v1615, %v1690
        %v1692 = vpop.f32.mrb[0].mxu0
        %1693 = vdwg.mxu0
        %v1694 = vadd.f32 %v1691, %v432
        %v1695 = vxor.u32 %v1694, 2147483648
        %v1696 = vmul.f32 %v1695, 1.442695
        %v1697 = vpow.pop %v1696
        %v1698 = vadd.f32 %v1697, 1.0
        %v1699 = vrcp.pop %v1698
        %v1700 = vmul.f32 1.0, %v1699
        %v1701 = vtanh.pop %v1694
        %v1702 = vmul.f32 %v1700, %v1532
        %1704 = vrot.lane.b32.xlu0 %v1701, 96
        %v1705 = vpop.permute.xlu0 %1704
        %v1707 = vmul.f32 %v1700, %v1705
        %1709 = vrot.lane.b32.xlu0 %v1707, 96
        %v1710 = vpop.permute.xlu0 %1709
        %v1712 = vadd.f32 %v1702, %v1710
        %v1713 = vtanh.pop %v1712
        %1715 = vrot.lane.b32.xlu0 %v1700, 32
        %v1716 = vpop.permute.xlu0 %1715
        %v1718 = vmul.f32 %v1713, %v1716
        %s1719 = scalar_lea.vmem %s252, 28 [#allocation5]
        %1720 = vst.msk [vmem:[%s1719] sm:$0x3] %vm459, %v1712
        %s1721 = scalar_lea.vmem %s252, 30 [#allocation5]
        %1722 = vst.msk [vmem:[%s1721] sm:$0x3] %vm459, %v1718
        %1723 = vst.msk [vmem:[#allocation2] sm:$0x3] %vm459, %v1712
        %1724 = vst.msk [vmem:[#allocation3] sm:$0x3] %vm459, %v1718
        %s1725 = sand.u32 %s131, 1
        %s1726 = scalar_lea.sflag [#allocation6], %s1725
        %s1727 = sand.u32 %s131, 1
        %s1728 = smul.addr %s1727, 32
        %s1729 = scalar_lea.vmem [#allocation5], %s1728
        // Predicated region
        $region79: #{lstm_forward.1} parent=69 // pred_check
          %p1730 = pneg %p141
        $region80: #{lstm_forward.1} parent=69 // pred_check_branch
          %1732 = sbr.rel (%p1730) target = $region82
        $region81: #{lstm_forward.1} parent=69 // pred_region
          %s1733 = smul.u32 8, %s23
          %s1735 = ssub.s32 512, 512
          %1736 = vsyncadd %s1726, %s1735
          %s1737 = smul.addr %s1733, 2
          %s1738 = sadd.s32 %s22, %s1737
          %s1739 = smul.addr %s1738, 32
          %s1740 = scalar_lea.hbm %s4, %s1739
          %s1741 = sshll.u32 %s1729, 4
          %s1742 = int_to_ptr.vmem [resolvable:$true] %s1741
          %1747 = dma.vmem_to_hbm [thread:$0]  %s1742, 512, %s1740, %s1726, 32, 32, 2
        $region82: #{lstm_forward.1} parent=69 // pred_fallthru
          _
      $region70: #{lstm_forward.1} parent=5 // pred_fallthru
        _
      %p1748 = scmp.le.s32.totalorder 2, %s13
      // Predicated region
      $region83: #{lstm_forward.1} parent=5 // pred_check
        %p1749 = pneg %p1748
      $region84: #{lstm_forward.1} parent=5 // pred_check_branch
        %1751 = sbr.rel (%p1749) target = $region86
      $region85: #{lstm_forward.1} parent=5 // pred_region
        %s1752 = ssub.s32 %s13, 2
        // Predicated region
        $region87: #{lstm_forward.1} parent=85 // pred_check
          %p1753 = pneg %p147
        $region88: #{lstm_forward.1} parent=85 // pred_check_branch
          %1755 = sbr.rel (%p1753) target = $region90
        $region89: #{lstm_forward.1} parent=85 // pred_region
          %s1756 = sand.u32 %s132, 1
          %s1757 = scalar_lea.sflag [#allocation6], %s1756
          %s1758 = sand.u32 %s132, 1
          %s1759 = smul.addr %s1758, 32
          %s1760 = scalar_lea.vmem [#allocation5], %s1759
          %1761 = dma.done %s1757, 512
        $region90: #{lstm_forward.1} parent=85 // pred_fallthru
          _
      $region86: #{lstm_forward.1} parent=5 // pred_fallthru
        _
    $region6: #{lstm_forward.1} parent=1 // loop_footer
      %s17 = sadd.s32 1, %s13
    $region7: #{lstm_forward.1} parent=1 // loop_footer_branch
      %12 = sbr.rel target = $region3
    $region8: #{lstm_forward.1} parent=1 // loop_exit
      _
    %1762 = vsyncpa [#allocation6], 1
    %s1763 = scalar_lea.sflag [#allocation6], 1
    %1764 = vsyncpa %s1763, 1

</llo_original>
